<compile_context>
chip_gen: v5e
topology: v5e:2x2
jax: 0.10.0
libtpu: 0.0.40
codegen_flags: <defaults>
</compile_context>

<pallas_src>
import functools
import math

import jax
import jax.numpy as jnp
from jax.experimental import pallas as pl
from jax.experimental.pallas import tpu as pltpu


def _choose_tb(n, target_rows=256):
    """tb multiple of 8 with (tb*n) % 128 == 0 and tb*n >= target_rows."""
    need = 128 // math.gcd(n, 128)           # (tb*n)%128==0  <=>  tb % need == 0
    base = 8 * need // math.gcd(8, need)     # lcm(8, need)
    mult = max(1, -(-target_rows // (base * n)))
    return base * mult


def _tower_node0_score(ids, adjl, adst, tbl, same, *, tb, rows, heads, vpad):
    """Folded (GATConv node-0 output) . mlp_half for tb samples.

    ids:  (1, rows)   int32 flattened neighbor ids (rows = tb * n)
    adjl: (1, rows)   f32 flattened adjacency row of node 0 (self-loop folded)
    adst: (tb, heads) f32 per-sample dst attention terms (node 0)
    tbl:  (cpad, vpad) f32 resident table: rows [0:heads] = value path (1/heads
          folded in), rows [heads:2*heads] = src attention path
    same: (tb, rows)  f32 resident block-diagonal sample mask
    returns (tb, 1) f32
    """
    # In-kernel embedding gather as a one-hot MXU matmul (ids never leave int32
    # in HBM; the folded table is VMEM-resident).
    onehot = (jax.lax.broadcasted_iota(jnp.int32, (vpad, rows), 0)
              == ids).astype(jnp.float32)                       # (vpad, rows)
    az = jnp.dot(tbl, onehot, preferred_element_type=jnp.float32)  # (cpad, rows)

    adj_full = adjl * same                                      # (tb, rows)
    edge = adj_full > 0.0
    neg = jnp.float32(-1e30)

    s = jnp.zeros((tb, 1), jnp.float32)
    for h in range(heads):                                      # heads is small, static unroll
        e = adst[:, h:h + 1] + az[heads + h:heads + h + 1, :]   # (tb, rows) logits
        e = jnp.where(e >= 0.0, e, 0.2 * e)                     # LeakyReLU(0.2)
        e = jnp.where(edge, e, neg)                             # mask non-edges / other samples
        e = e - jnp.max(e, axis=-1, keepdims=True)              # numerical stability
        p = jnp.exp(e) * adj_full                               # unnormalized attention
        num = jnp.sum(p * az[h:h + 1, :], axis=-1, keepdims=True)   # (tb, 1)
        den = jnp.sum(p, axis=-1, keepdims=True)                    # (tb, 1)
        s = s + num * pl.reciprocal(den, approx=True)           # normalize after aggregation
    return s


def gat_model_kernel(ids1_ref, adjl1_ref, adst1_ref,
                     ids2_ref, adjl2_ref, adst2_ref,
                     tbl1_ref, tbl2_ref, same_ref, cbias_ref,
                     o_ref, *, tb, n, heads, vpad):
    rows = tb * n
    same = same_ref[...]
    s1 = _tower_node0_score(ids1_ref[...], adjl1_ref[...], adst1_ref[...],
                            tbl1_ref[...], same,
                            tb=tb, rows=rows, heads=heads, vpad=vpad)
    s2 = _tower_node0_score(ids2_ref[...], adjl2_ref[...], adst2_ref[...],
                            tbl2_ref[...], same,
                            tb=tb, rows=rows, heads=heads, vpad=vpad)
    # (tb, 1) store: no 128-lane broadcast, tiny output traffic.
    o_ref[...] = s1 + s2 + cbias_ref[...]


def gat_model_forward(neighbors1, neighbors2, adj1, adj2, params, *, tb=None):
    emb = params["embedding"].astype(jnp.float32)
    heads = int(params["heads"])
    B, N = neighbors1.shape
    V, H = emb.shape
    hi = jax.lax.Precision.HIGHEST

    if tb is None:
        tb = _choose_tb(N)
    num_blocks = -(-B // tb)
    B_pad = num_blocks * tb
    rows = tb * N
    vpad = -(-V // 128) * 128
    cpad = -(-(2 * heads) // 8) * 8

    mlp_w = params["mlp_w"].astype(jnp.float32)        # (1, 2H)
    m1, m2 = mlp_w[0, :H], mlp_w[0, H:]

    # Fold GATConv weights + attention vectors + MLP half into per-vocab tables
    # (done once, in f32 HIGHEST precision; tables stay f32 since they are
    # resident constants, the streamed data is int ids + tiny masks).
    def fold(W, a_src, a_dst, m_half):
        W3 = W.astype(jnp.float32).reshape(H, heads, H)                  # W3[e,h,d]
        U = jnp.einsum("ehd,d->eh", W3, m_half, precision=hi) / heads    # (H, heads)
        Cs = jnp.einsum("ehd,hd->eh", W3, a_src.astype(jnp.float32), precision=hi)
        Cd = jnp.einsum("ehd,hd->eh", W3, a_dst.astype(jnp.float32), precision=hi)
        Tz = jnp.dot(emb, U, precision=hi)                               # (V, heads)
        Tsrc = jnp.dot(emb, Cs, precision=hi)
        Tdst = jnp.dot(emb, Cd, precision=hi)
        tbl = jnp.concatenate([Tz, Tsrc], axis=1).T                      # (2*heads, V)
        tbl = jnp.pad(tbl, ((0, cpad - 2 * heads), (0, vpad - V)))
        return tbl, Tdst

    tbl1, Tdst1 = fold(params["w1"], params["a_src1"], params["a_dst1"], m1)
    tbl2, Tdst2 = fold(params["w2"], params["a_src2"], params["a_dst2"], m2)

    cbias = (jnp.dot(params["bias1"].astype(jnp.float32)[0], m1, precision=hi)
             + jnp.dot(params["bias2"].astype(jnp.float32)[0], m2, precision=hi)
             + params["mlp_b"].astype(jnp.float32)[0, 0]).reshape(1, 1)

    def pad_b(a):
        if B_pad == B:
            return a
        return jnp.pad(a, [(0, B_pad - B)] + [(0, 0)] * (a.ndim - 1))

    n1 = pad_b(neighbors1.astype(jnp.int32))
    n2 = pad_b(neighbors2.astype(jnp.int32))
    ids1 = n1.reshape(1, B_pad * N)                     # lane-flattened ids
    ids2 = n2.reshape(1, B_pad * N)

    # Adjacency row of target node 0 with the node-0 self-loop folded in
    # (keeps padded batch rows' softmax denominator nonzero).
    self_loop = (jnp.arange(N) == 0).astype(jnp.float32)[None, :]
    adjr1 = jnp.maximum(pad_b(adj1[:, 0, :].astype(jnp.float32)), self_loop)
    adjr2 = jnp.maximum(pad_b(adj2[:, 0, :].astype(jnp.float32)), self_loop)
    adjl1 = adjr1.reshape(1, B_pad * N)
    adjl2 = adjr2.reshape(1, B_pad * N)

    # Per-sample dst attention terms (node 0 only) via a tiny table gather.
    adst1 = Tdst1[n1[:, 0]]                             # (B_pad, heads)
    adst2 = Tdst2[n2[:, 0]]

    # Block-diagonal sample mask, hoisted out of the kernel (resident input).
    same = ((jnp.arange(rows)[None, :] // N)
            == jnp.arange(tb)[:, None]).astype(jnp.float32)   # (tb, rows)

    row_spec = pl.BlockSpec((1, rows), lambda b: (0, b))
    out = pl.pallas_call(
        functools.partial(gat_model_kernel, tb=tb, n=N, heads=heads, vpad=vpad),
        out_shape=jax.ShapeDtypeStruct((B_pad, 1), jnp.float32),
        grid=(num_blocks,),
        in_specs=[row_spec,                                        # ids1
                  row_spec,                                        # adjl1
                  pl.BlockSpec((tb, heads), lambda b: (b, 0)),     # adst1
                  row_spec,                                        # ids2
                  row_spec,                                        # adjl2
                  pl.BlockSpec((tb, heads), lambda b: (b, 0)),     # adst2
                  pl.BlockSpec((cpad, vpad), lambda b: (0, 0)),    # tbl1 (resident)
                  pl.BlockSpec((cpad, vpad), lambda b: (0, 0)),    # tbl2 (resident)
                  pl.BlockSpec((tb, rows), lambda b: (0, 0)),      # same (resident)
                  pl.BlockSpec((1, 1), lambda b: (0, 0))],         # cbias (resident)
        out_specs=pl.BlockSpec((tb, 1), lambda b: (b, 0)),
        compiler_params=pltpu.CompilerParams(
            dimension_semantics=("parallel",)),
    )(ids1, adjl1, adst1, ids2, adjl2, adst2, tbl1, tbl2, same, cbias)
    return out[:B, 0]      # matches torch.cat(outputs) -> shape (B,)


def _reference_forward(neighbors1, neighbors2, adj1, adj2, params):
    """Pure-JAX reference (full dense GAT on every node, then node 0)."""
    emb = params["embedding"]
    heads = params["heads"]
    H = emb.shape[1]
    hi = jax.lax.Precision.HIGHEST

    def gat(x, adj, W, a_src, a_dst, bias):
        n = x.shape[0]
        adj = jnp.maximum(adj, jnp.eye(n, dtype=adj.dtype))
        xw = jnp.dot(x, W, precision=hi).reshape(n, heads, H)
        a_s = jnp.einsum("nhd,hd->nh", xw, a_src, precision=hi)
        a_d = jnp.einsum("nhd,hd->nh", xw, a_dst, precision=hi)
        e = a_d[:, None, :] + a_s[None, :, :]                 # (n, n, heads)
        e = jnp.where(e >= 0.0, e, 0.2 * e)
        mask = (adj > 0.0)[:, :, None]
        e = jnp.where(mask, e, -1e30)
        e = e - e.max(axis=1, keepdims=True)
        p = jnp.exp(e) * mask.astype(jnp.float32)
        attn = p / p.sum(axis=1, keepdims=True)
        out = jnp.einsum("ijh,jhd->ihd", attn, xw, precision=hi).mean(axis=1)
        return out + bias

    outs = []
    for i in range(neighbors1.shape[0]):
        x1 = emb[neighbors1[i]].astype(jnp.float32)
        x2 = emb[neighbors2[i]].astype(jnp.float32)
        f1 = gat(x1, adj1[i], params["w1"], params["a_src1"],
                 params["a_dst1"], params["bias1"])[0]
        f2 = gat(x2, adj2[i], params["w2"], params["a_src2"],
                 params["a_dst2"], params["bias2"])[0]
        f = jnp.concatenate([f1, f2])
        outs.append(jnp.dot(f, params["mlp_w"][0], precision=hi)
                    + params["mlp_b"][0, 0])
    return jnp.stack(outs)


if __name__ == "__main__":
    B, N, H, heads, vocab = 4, 8, 32, 4, 16
    key = jax.random.PRNGKey(0)
    ks = jax.random.split(key, 16)
    params = {
        "heads": heads,
        "embedding": 0.1 * jax.random.normal(ks[0], (vocab + 1, H), jnp.float32),
        "w1":     0.1 * jax.random.normal(ks[1], (H, heads * H), jnp.float32),
        "a_src1": 0.1 * jax.random.normal(ks[2], (heads, H), jnp.float32),
        "a_dst1": 0.1 * jax.random.normal(ks[3], (heads, H), jnp.float32),
        "bias1":  0.1 * jax.random.normal(ks[4], (1, H), jnp.float32),
        "w2":     0.1 * jax.random.normal(ks[5], (H, heads * H), jnp.float32),
        "a_src2": 0.1 * jax.random.normal(ks[6], (heads, H), jnp.float32),
        "a_dst2": 0.1 * jax.random.normal(ks[7], (heads, H), jnp.float32),
        "bias2":  0.1 * jax.random.normal(ks[8], (1, H), jnp.float32),
        "mlp_w":  0.1 * jax.random.normal(ks[9], (1, 2 * H), jnp.float32),
        "mlp_b":  jnp.zeros((1, 1), jnp.float32),
    }

    neighbors1 = jax.random.randint(ks[10], (B, N), 0, vocab + 1, dtype=jnp.int32)
    neighbors2 = jax.random.randint(ks[11], (B, N), 0, vocab + 1, dtype=jnp.int32)
    adj1 = (jax.random.uniform(ks[12], (B, N, N)) > 0.5).astype(jnp.float32)
    adj2 = (jax.random.uniform(ks[13], (B, N, N)) > 0.5).astype(jnp.float32)

    out = gat_model_forward(neighbors1, neighbors2, adj1, adj2, params)
    jax.block_until_ready(out)
    assert out.shape == (B,)

    ref = _reference_forward(neighbors1, neighbors2, adj1, adj2, params)
    assert bool(jnp.allclose(out, ref, rtol=2e-2, atol=2e-3)), (
        "kernel/reference mismatch: max abs diff "
        f"{float(jnp.max(jnp.abs(out - ref)))}")
    print("KERNEL_OK")
</pallas_src>

<mosaic_0001>
module attributes {stable_mosaic.version = 11 : i64} {
  func.func @gat_model_kernel(%arg0: i32, %arg1: memref<1x256xi32, #tpu.memory_space<vmem>>, %arg2: memref<1x256xf32, #tpu.memory_space<vmem>>, %arg3: memref<32x4xf32, #tpu.memory_space<vmem>>, %arg4: memref<1x256xi32, #tpu.memory_space<vmem>>, %arg5: memref<1x256xf32, #tpu.memory_space<vmem>>, %arg6: memref<32x4xf32, #tpu.memory_space<vmem>>, %arg7: memref<8x128xf32, #tpu.memory_space<vmem>>, %arg8: memref<8x128xf32, #tpu.memory_space<vmem>>, %arg9: memref<32x256xf32, #tpu.memory_space<vmem>>, %arg10: memref<1x1xf32, #tpu.memory_space<vmem>>, %arg11: memref<32x1xf32, #tpu.memory_space<vmem>>) attributes {dimension_semantics = [#tpu.dimension_semantics<parallel>], iteration_bounds = array<i64: 1>, scalar_prefetch = 0 : i64, scratch_operands = 0 : i64, tpu.core_type = #tpu.core_type<tc>, window_params = [{transform_indices = @transform_0, window_bounds = array<i64: 1, 256>}, {transform_indices = @transform_1, window_bounds = array<i64: 1, 256>}, {transform_indices = @transform_2, window_bounds = array<i64: 32, 4>}, {transform_indices = @transform_3, window_bounds = array<i64: 1, 256>}, {transform_indices = @transform_4, window_bounds = array<i64: 1, 256>}, {transform_indices = @transform_5, window_bounds = array<i64: 32, 4>}, {pipeline_mode = #tpu.pipeline_mode<synchronous>, transform_indices = @transform_6, window_bounds = array<i64: 8, 128>}, {pipeline_mode = #tpu.pipeline_mode<synchronous>, transform_indices = @transform_7, window_bounds = array<i64: 8, 128>}, {pipeline_mode = #tpu.pipeline_mode<synchronous>, transform_indices = @transform_8, window_bounds = array<i64: 32, 256>}, {pipeline_mode = #tpu.pipeline_mode<synchronous>, transform_indices = @transform_9, window_bounds = array<i64: 1, 1>}, {transform_indices = @transform_10, window_bounds = array<i64: 32, 1>}]} {
    %c0 = arith.constant 0 : index
    %c0_0 = arith.constant 0 : index
    %0 = vector.load %arg9[%c0, %c0_0] : memref<32x256xf32, #tpu.memory_space<vmem>>, vector<32x256xf32>
    %c0_1 = arith.constant 0 : index
    %c0_2 = arith.constant 0 : index
    %1 = vector.load %arg1[%c0_1, %c0_2] : memref<1x256xi32, #tpu.memory_space<vmem>>, vector<1x256xi32>
    %c0_3 = arith.constant 0 : index
    %c0_4 = arith.constant 0 : index
    %2 = vector.load %arg2[%c0_3, %c0_4] : memref<1x256xf32, #tpu.memory_space<vmem>>, vector<1x256xf32>
    %c0_5 = arith.constant 0 : index
    %c0_6 = arith.constant 0 : index
    %3 = vector.load %arg3[%c0_5, %c0_6] : memref<32x4xf32, #tpu.memory_space<vmem>>, vector<32x4xf32>
    %c0_7 = arith.constant 0 : index
    %c0_8 = arith.constant 0 : index
    %4 = vector.load %arg7[%c0_7, %c0_8] : memref<8x128xf32, #tpu.memory_space<vmem>>, vector<8x128xf32>
    %5 = tpu.iota {dimensions = array<i32: 0>} : vector<128x256xi32>
    %6 = vector.broadcast %1 : vector<1x256xi32> to vector<128x256xi32>
    %7 = arith.cmpi eq, %5, %6 : vector<128x256xi32>
    %8 = arith.extui %7 : vector<128x256xi1> to vector<128x256xi32>
    %9 = arith.sitofp %8 : vector<128x256xi32> to vector<128x256xf32>
    %cst = arith.constant dense<0.000000e+00> : vector<8x256xf32>
    %10 = tpu.matmul %4, %9, %cst {dimension_numbers = #tpu.dot_dimension_numbers<[1], [0], [0], [1], [0, 0, 1, 1], [], []>} : vector<8x128xf32>, vector<128x256xf32>, vector<8x256xf32> -> vector<8x256xf32>
    %11 = vector.broadcast %2 : vector<1x256xf32> to vector<32x256xf32>
    %12 = arith.mulf %11, %0 : vector<32x256xf32>
    %cst_9 = arith.constant 0.000000e+00 : f32
    %13 = vector.broadcast %cst_9 : f32 to vector<32x256xf32>
    %14 = arith.cmpf ogt, %12, %13 : vector<32x256xf32>
    %cst_10 = arith.constant 0.000000e+00 : f32
    %15 = vector.broadcast %cst_10 : f32 to vector<32x1xf32>
    %16 = vector.extract_strided_slice %3 {offsets = [0, 0], sizes = [32, 1], strides = [1, 1]} : vector<32x4xf32> to vector<32x1xf32>
    %17 = vector.extract_strided_slice %10 {offsets = [4, 0], sizes = [1, 256], strides = [1, 1]} : vector<8x256xf32> to vector<1x256xf32>
    %18 = vector.broadcast %16 : vector<32x1xf32> to vector<32x256xf32>
    %19 = vector.broadcast %17 : vector<1x256xf32> to vector<32x256xf32>
    %20 = arith.addf %18, %19 : vector<32x256xf32>
    %cst_11 = arith.constant 0.000000e+00 : f32
    %21 = vector.broadcast %cst_11 : f32 to vector<32x256xf32>
    %22 = arith.cmpf oge, %20, %21 : vector<32x256xf32>
    %cst_12 = arith.constant 2.000000e-01 : f32
    %23 = vector.broadcast %cst_12 : f32 to vector<32x256xf32>
    %24 = arith.mulf %23, %20 : vector<32x256xf32>
    %25 = arith.select %22, %20, %24 : vector<32x256xi1>, vector<32x256xf32>
    %cst_13 = arith.constant -1.000000e+30 : f32
    %26 = vector.broadcast %cst_13 : f32 to vector<32x256xf32>
    %27 = arith.select %14, %25, %26 : vector<32x256xi1>, vector<32x256xf32>
    %cst_14 = arith.constant dense<0xFF800000> : vector<32xf32>
    %28 = vector.multi_reduction <maximumf>, %27, %cst_14 [1] : vector<32x256xf32> to vector<32xf32>
    %29 = vector.shape_cast %28 : vector<32xf32> to vector<32x1xf32>
    %30 = vector.broadcast %29 : vector<32x1xf32> to vector<32x256xf32>
    %31 = arith.subf %27, %30 : vector<32x256xf32>
    %32 = math.exp %31 : vector<32x256xf32>
    %33 = arith.mulf %32, %12 : vector<32x256xf32>
    %34 = vector.extract_strided_slice %10 {offsets = [0, 0], sizes = [1, 256], strides = [1, 1]} : vector<8x256xf32> to vector<1x256xf32>
    %35 = vector.broadcast %34 : vector<1x256xf32> to vector<32x256xf32>
    %36 = arith.mulf %33, %35 : vector<32x256xf32>
    %cst_15 = arith.constant dense<0.000000e+00> : vector<32xf32>
    %37 = vector.multi_reduction <add>, %36, %cst_15 [1] : vector<32x256xf32> to vector<32xf32>
    %38 = vector.shape_cast %37 : vector<32xf32> to vector<32x1xf32>
    %cst_16 = arith.constant dense<0.000000e+00> : vector<32xf32>
    %39 = vector.multi_reduction <add>, %33, %cst_16 [1] : vector<32x256xf32> to vector<32xf32>
    %40 = vector.shape_cast %39 : vector<32xf32> to vector<32x1xf32>
    %41 = tpu.reciprocal %40 {approx = true} : vector<32x1xf32> -> vector<32x1xf32>
    %42 = arith.mulf %38, %41 : vector<32x1xf32>
    %43 = arith.addf %15, %42 : vector<32x1xf32>
    %44 = vector.extract_strided_slice %3 {offsets = [0, 1], sizes = [32, 1], strides = [1, 1]} : vector<32x4xf32> to vector<32x1xf32>
    %45 = vector.extract_strided_slice %10 {offsets = [5, 0], sizes = [1, 256], strides = [1, 1]} : vector<8x256xf32> to vector<1x256xf32>
    %46 = vector.broadcast %44 : vector<32x1xf32> to vector<32x256xf32>
    %47 = vector.broadcast %45 : vector<1x256xf32> to vector<32x256xf32>
    %48 = arith.addf %46, %47 : vector<32x256xf32>
    %cst_17 = arith.constant 0.000000e+00 : f32
    %49 = vector.broadcast %cst_17 : f32 to vector<32x256xf32>
    %50 = arith.cmpf oge, %48, %49 : vector<32x256xf32>
    %cst_18 = arith.constant 2.000000e-01 : f32
    %51 = vector.broadcast %cst_18 : f32 to vector<32x256xf32>
    %52 = arith.mulf %51, %48 : vector<32x256xf32>
    %53 = arith.select %50, %48, %52 : vector<32x256xi1>, vector<32x256xf32>
    %cst_19 = arith.constant -1.000000e+30 : f32
    %54 = vector.broadcast %cst_19 : f32 to vector<32x256xf32>
    %55 = arith.select %14, %53, %54 : vector<32x256xi1>, vector<32x256xf32>
    %cst_20 = arith.constant dense<0xFF800000> : vector<32xf32>
    %56 = vector.multi_reduction <maximumf>, %55, %cst_20 [1] : vector<32x256xf32> to vector<32xf32>
    %57 = vector.shape_cast %56 : vector<32xf32> to vector<32x1xf32>
    %58 = vector.broadcast %57 : vector<32x1xf32> to vector<32x256xf32>
    %59 = arith.subf %55, %58 : vector<32x256xf32>
    %60 = math.exp %59 : vector<32x256xf32>
    %61 = arith.mulf %60, %12 : vector<32x256xf32>
    %62 = vector.extract_strided_slice %10 {offsets = [1, 0], sizes = [1, 256], strides = [1, 1]} : vector<8x256xf32> to vector<1x256xf32>
    %63 = vector.broadcast %62 : vector<1x256xf32> to vector<32x256xf32>
    %64 = arith.mulf %61, %63 : vector<32x256xf32>
    %cst_21 = arith.constant dense<0.000000e+00> : vector<32xf32>
    %65 = vector.multi_reduction <add>, %64, %cst_21 [1] : vector<32x256xf32> to vector<32xf32>
    %66 = vector.shape_cast %65 : vector<32xf32> to vector<32x1xf32>
    %cst_22 = arith.constant dense<0.000000e+00> : vector<32xf32>
    %67 = vector.multi_reduction <add>, %61, %cst_22 [1] : vector<32x256xf32> to vector<32xf32>
    %68 = vector.shape_cast %67 : vector<32xf32> to vector<32x1xf32>
    %69 = tpu.reciprocal %68 {approx = true} : vector<32x1xf32> -> vector<32x1xf32>
    %70 = arith.mulf %66, %69 : vector<32x1xf32>
    %71 = arith.addf %43, %70 : vector<32x1xf32>
    %72 = vector.extract_strided_slice %3 {offsets = [0, 2], sizes = [32, 1], strides = [1, 1]} : vector<32x4xf32> to vector<32x1xf32>
    %73 = vector.extract_strided_slice %10 {offsets = [6, 0], sizes = [1, 256], strides = [1, 1]} : vector<8x256xf32> to vector<1x256xf32>
    %74 = vector.broadcast %72 : vector<32x1xf32> to vector<32x256xf32>
    %75 = vector.broadcast %73 : vector<1x256xf32> to vector<32x256xf32>
    %76 = arith.addf %74, %75 : vector<32x256xf32>
    %cst_23 = arith.constant 0.000000e+00 : f32
    %77 = vector.broadcast %cst_23 : f32 to vector<32x256xf32>
    %78 = arith.cmpf oge, %76, %77 : vector<32x256xf32>
    %cst_24 = arith.constant 2.000000e-01 : f32
    %79 = vector.broadcast %cst_24 : f32 to vector<32x256xf32>
    %80 = arith.mulf %79, %76 : vector<32x256xf32>
    %81 = arith.select %78, %76, %80 : vector<32x256xi1>, vector<32x256xf32>
    %cst_25 = arith.constant -1.000000e+30 : f32
    %82 = vector.broadcast %cst_25 : f32 to vector<32x256xf32>
    %83 = arith.select %14, %81, %82 : vector<32x256xi1>, vector<32x256xf32>
    %cst_26 = arith.constant dense<0xFF800000> : vector<32xf32>
    %84 = vector.multi_reduction <maximumf>, %83, %cst_26 [1] : vector<32x256xf32> to vector<32xf32>
    %85 = vector.shape_cast %84 : vector<32xf32> to vector<32x1xf32>
    %86 = vector.broadcast %85 : vector<32x1xf32> to vector<32x256xf32>
    %87 = arith.subf %83, %86 : vector<32x256xf32>
    %88 = math.exp %87 : vector<32x256xf32>
    %89 = arith.mulf %88, %12 : vector<32x256xf32>
    %90 = vector.extract_strided_slice %10 {offsets = [2, 0], sizes = [1, 256], strides = [1, 1]} : vector<8x256xf32> to vector<1x256xf32>
    %91 = vector.broadcast %90 : vector<1x256xf32> to vector<32x256xf32>
    %92 = arith.mulf %89, %91 : vector<32x256xf32>
    %cst_27 = arith.constant dense<0.000000e+00> : vector<32xf32>
    %93 = vector.multi_reduction <add>, %92, %cst_27 [1] : vector<32x256xf32> to vector<32xf32>
    %94 = vector.shape_cast %93 : vector<32xf32> to vector<32x1xf32>
    %cst_28 = arith.constant dense<0.000000e+00> : vector<32xf32>
    %95 = vector.multi_reduction <add>, %89, %cst_28 [1] : vector<32x256xf32> to vector<32xf32>
    %96 = vector.shape_cast %95 : vector<32xf32> to vector<32x1xf32>
    %97 = tpu.reciprocal %96 {approx = true} : vector<32x1xf32> -> vector<32x1xf32>
    %98 = arith.mulf %94, %97 : vector<32x1xf32>
    %99 = arith.addf %71, %98 : vector<32x1xf32>
    %100 = vector.extract_strided_slice %3 {offsets = [0, 3], sizes = [32, 1], strides = [1, 1]} : vector<32x4xf32> to vector<32x1xf32>
    %101 = vector.extract_strided_slice %10 {offsets = [7, 0], sizes = [1, 256], strides = [1, 1]} : vector<8x256xf32> to vector<1x256xf32>
    %102 = vector.broadcast %100 : vector<32x1xf32> to vector<32x256xf32>
    %103 = vector.broadcast %101 : vector<1x256xf32> to vector<32x256xf32>
    %104 = arith.addf %102, %103 : vector<32x256xf32>
    %cst_29 = arith.constant 0.000000e+00 : f32
    %105 = vector.broadcast %cst_29 : f32 to vector<32x256xf32>
    %106 = arith.cmpf oge, %104, %105 : vector<32x256xf32>
    %cst_30 = arith.constant 2.000000e-01 : f32
    %107 = vector.broadcast %cst_30 : f32 to vector<32x256xf32>
    %108 = arith.mulf %107, %104 : vector<32x256xf32>
    %109 = arith.select %106, %104, %108 : vector<32x256xi1>, vector<32x256xf32>
    %cst_31 = arith.constant -1.000000e+30 : f32
    %110 = vector.broadcast %cst_31 : f32 to vector<32x256xf32>
    %111 = arith.select %14, %109, %110 : vector<32x256xi1>, vector<32x256xf32>
    %cst_32 = arith.constant dense<0xFF800000> : vector<32xf32>
    %112 = vector.multi_reduction <maximumf>, %111, %cst_32 [1] : vector<32x256xf32> to vector<32xf32>
    %113 = vector.shape_cast %112 : vector<32xf32> to vector<32x1xf32>
    %114 = vector.broadcast %113 : vector<32x1xf32> to vector<32x256xf32>
    %115 = arith.subf %111, %114 : vector<32x256xf32>
    %116 = math.exp %115 : vector<32x256xf32>
    %117 = arith.mulf %116, %12 : vector<32x256xf32>
    %118 = vector.extract_strided_slice %10 {offsets = [3, 0], sizes = [1, 256], strides = [1, 1]} : vector<8x256xf32> to vector<1x256xf32>
    %119 = vector.broadcast %118 : vector<1x256xf32> to vector<32x256xf32>
    %120 = arith.mulf %117, %119 : vector<32x256xf32>
    %cst_33 = arith.constant dense<0.000000e+00> : vector<32xf32>
    %121 = vector.multi_reduction <add>, %120, %cst_33 [1] : vector<32x256xf32> to vector<32xf32>
    %122 = vector.shape_cast %121 : vector<32xf32> to vector<32x1xf32>
    %cst_34 = arith.constant dense<0.000000e+00> : vector<32xf32>
    %123 = vector.multi_reduction <add>, %117, %cst_34 [1] : vector<32x256xf32> to vector<32xf32>
    %124 = vector.shape_cast %123 : vector<32xf32> to vector<32x1xf32>
    %125 = tpu.reciprocal %124 {approx = true} : vector<32x1xf32> -> vector<32x1xf32>
    %126 = arith.mulf %122, %125 : vector<32x1xf32>
    %127 = arith.addf %99, %126 : vector<32x1xf32>
    %c0_35 = arith.constant 0 : index
    %c0_36 = arith.constant 0 : index
    %128 = vector.load %arg4[%c0_35, %c0_36] : memref<1x256xi32, #tpu.memory_space<vmem>>, vector<1x256xi32>
    %c0_37 = arith.constant 0 : index
    %c0_38 = arith.constant 0 : index
    %129 = vector.load %arg5[%c0_37, %c0_38] : memref<1x256xf32, #tpu.memory_space<vmem>>, vector<1x256xf32>
    %c0_39 = arith.constant 0 : index
    %c0_40 = arith.constant 0 : index
    %130 = vector.load %arg6[%c0_39, %c0_40] : memref<32x4xf32, #tpu.memory_space<vmem>>, vector<32x4xf32>
    %c0_41 = arith.constant 0 : index
    %c0_42 = arith.constant 0 : index
    %131 = vector.load %arg8[%c0_41, %c0_42] : memref<8x128xf32, #tpu.memory_space<vmem>>, vector<8x128xf32>
    %132 = tpu.iota {dimensions = array<i32: 0>} : vector<128x256xi32>
    %133 = vector.broadcast %128 : vector<1x256xi32> to vector<128x256xi32>
    %134 = arith.cmpi eq, %132, %133 : vector<128x256xi32>
    %135 = arith.extui %134 : vector<128x256xi1> to vector<128x256xi32>
    %136 = arith.sitofp %135 : vector<128x256xi32> to vector<128x256xf32>
    %cst_43 = arith.constant dense<0.000000e+00> : vector<8x256xf32>
    %137 = tpu.matmul %131, %136, %cst_43 {dimension_numbers = #tpu.dot_dimension_numbers<[1], [0], [0], [1], [0, 0, 1, 1], [], []>} : vector<8x128xf32>, vector<128x256xf32>, vector<8x256xf32> -> vector<8x256xf32>
    %138 = vector.broadcast %129 : vector<1x256xf32> to vector<32x256xf32>
    %139 = arith.mulf %138, %0 : vector<32x256xf32>
    %cst_44 = arith.constant 0.000000e+00 : f32
    %140 = vector.broadcast %cst_44 : f32 to vector<32x256xf32>
    %141 = arith.cmpf ogt, %139, %140 : vector<32x256xf32>
    %cst_45 = arith.constant 0.000000e+00 : f32
    %142 = vector.broadcast %cst_45 : f32 to vector<32x1xf32>
    %143 = vector.extract_strided_slice %130 {offsets = [0, 0], sizes = [32, 1], strides = [1, 1]} : vector<32x4xf32> to vector<32x1xf32>
    %144 = vector.extract_strided_slice %137 {offsets = [4, 0], sizes = [1, 256], strides = [1, 1]} : vector<8x256xf32> to vector<1x256xf32>
    %145 = vector.broadcast %143 : vector<32x1xf32> to vector<32x256xf32>
    %146 = vector.broadcast %144 : vector<1x256xf32> to vector<32x256xf32>
    %147 = arith.addf %145, %146 : vector<32x256xf32>
    %cst_46 = arith.constant 0.000000e+00 : f32
    %148 = vector.broadcast %cst_46 : f32 to vector<32x256xf32>
    %149 = arith.cmpf oge, %147, %148 : vector<32x256xf32>
    %cst_47 = arith.constant 2.000000e-01 : f32
    %150 = vector.broadcast %cst_47 : f32 to vector<32x256xf32>
    %151 = arith.mulf %150, %147 : vector<32x256xf32>
    %152 = arith.select %149, %147, %151 : vector<32x256xi1>, vector<32x256xf32>
    %cst_48 = arith.constant -1.000000e+30 : f32
    %153 = vector.broadcast %cst_48 : f32 to vector<32x256xf32>
    %154 = arith.select %141, %152, %153 : vector<32x256xi1>, vector<32x256xf32>
    %cst_49 = arith.constant dense<0xFF800000> : vector<32xf32>
    %155 = vector.multi_reduction <maximumf>, %154, %cst_49 [1] : vector<32x256xf32> to vector<32xf32>
    %156 = vector.shape_cast %155 : vector<32xf32> to vector<32x1xf32>
    %157 = vector.broadcast %156 : vector<32x1xf32> to vector<32x256xf32>
    %158 = arith.subf %154, %157 : vector<32x256xf32>
    %159 = math.exp %158 : vector<32x256xf32>
    %160 = arith.mulf %159, %139 : vector<32x256xf32>
    %161 = vector.extract_strided_slice %137 {offsets = [0, 0], sizes = [1, 256], strides = [1, 1]} : vector<8x256xf32> to vector<1x256xf32>
    %162 = vector.broadcast %161 : vector<1x256xf32> to vector<32x256xf32>
    %163 = arith.mulf %160, %162 : vector<32x256xf32>
    %cst_50 = arith.constant dense<0.000000e+00> : vector<32xf32>
    %164 = vector.multi_reduction <add>, %163, %cst_50 [1] : vector<32x256xf32> to vector<32xf32>
    %165 = vector.shape_cast %164 : vector<32xf32> to vector<32x1xf32>
    %cst_51 = arith.constant dense<0.000000e+00> : vector<32xf32>
    %166 = vector.multi_reduction <add>, %160, %cst_51 [1] : vector<32x256xf32> to vector<32xf32>
    %167 = vector.shape_cast %166 : vector<32xf32> to vector<32x1xf32>
    %168 = tpu.reciprocal %167 {approx = true} : vector<32x1xf32> -> vector<32x1xf32>
    %169 = arith.mulf %165, %168 : vector<32x1xf32>
    %170 = arith.addf %142, %169 : vector<32x1xf32>
    %171 = vector.extract_strided_slice %130 {offsets = [0, 1], sizes = [32, 1], strides = [1, 1]} : vector<32x4xf32> to vector<32x1xf32>
    %172 = vector.extract_strided_slice %137 {offsets = [5, 0], sizes = [1, 256], strides = [1, 1]} : vector<8x256xf32> to vector<1x256xf32>
    %173 = vector.broadcast %171 : vector<32x1xf32> to vector<32x256xf32>
    %174 = vector.broadcast %172 : vector<1x256xf32> to vector<32x256xf32>
    %175 = arith.addf %173, %174 : vector<32x256xf32>
    %cst_52 = arith.constant 0.000000e+00 : f32
    %176 = vector.broadcast %cst_52 : f32 to vector<32x256xf32>
    %177 = arith.cmpf oge, %175, %176 : vector<32x256xf32>
    %cst_53 = arith.constant 2.000000e-01 : f32
    %178 = vector.broadcast %cst_53 : f32 to vector<32x256xf32>
    %179 = arith.mulf %178, %175 : vector<32x256xf32>
    %180 = arith.select %177, %175, %179 : vector<32x256xi1>, vector<32x256xf32>
    %cst_54 = arith.constant -1.000000e+30 : f32
    %181 = vector.broadcast %cst_54 : f32 to vector<32x256xf32>
    %182 = arith.select %141, %180, %181 : vector<32x256xi1>, vector<32x256xf32>
    %cst_55 = arith.constant dense<0xFF800000> : vector<32xf32>
    %183 = vector.multi_reduction <maximumf>, %182, %cst_55 [1] : vector<32x256xf32> to vector<32xf32>
    %184 = vector.shape_cast %183 : vector<32xf32> to vector<32x1xf32>
    %185 = vector.broadcast %184 : vector<32x1xf32> to vector<32x256xf32>
    %186 = arith.subf %182, %185 : vector<32x256xf32>
    %187 = math.exp %186 : vector<32x256xf32>
    %188 = arith.mulf %187, %139 : vector<32x256xf32>
    %189 = vector.extract_strided_slice %137 {offsets = [1, 0], sizes = [1, 256], strides = [1, 1]} : vector<8x256xf32> to vector<1x256xf32>
    %190 = vector.broadcast %189 : vector<1x256xf32> to vector<32x256xf32>
    %191 = arith.mulf %188, %190 : vector<32x256xf32>
    %cst_56 = arith.constant dense<0.000000e+00> : vector<32xf32>
    %192 = vector.multi_reduction <add>, %191, %cst_56 [1] : vector<32x256xf32> to vector<32xf32>
    %193 = vector.shape_cast %192 : vector<32xf32> to vector<32x1xf32>
    %cst_57 = arith.constant dense<0.000000e+00> : vector<32xf32>
    %194 = vector.multi_reduction <add>, %188, %cst_57 [1] : vector<32x256xf32> to vector<32xf32>
    %195 = vector.shape_cast %194 : vector<32xf32> to vector<32x1xf32>
    %196 = tpu.reciprocal %195 {approx = true} : vector<32x1xf32> -> vector<32x1xf32>
    %197 = arith.mulf %193, %196 : vector<32x1xf32>
    %198 = arith.addf %170, %197 : vector<32x1xf32>
    %199 = vector.extract_strided_slice %130 {offsets = [0, 2], sizes = [32, 1], strides = [1, 1]} : vector<32x4xf32> to vector<32x1xf32>
    %200 = vector.extract_strided_slice %137 {offsets = [6, 0], sizes = [1, 256], strides = [1, 1]} : vector<8x256xf32> to vector<1x256xf32>
    %201 = vector.broadcast %199 : vector<32x1xf32> to vector<32x256xf32>
    %202 = vector.broadcast %200 : vector<1x256xf32> to vector<32x256xf32>
    %203 = arith.addf %201, %202 : vector<32x256xf32>
    %cst_58 = arith.constant 0.000000e+00 : f32
    %204 = vector.broadcast %cst_58 : f32 to vector<32x256xf32>
    %205 = arith.cmpf oge, %203, %204 : vector<32x256xf32>
    %cst_59 = arith.constant 2.000000e-01 : f32
    %206 = vector.broadcast %cst_59 : f32 to vector<32x256xf32>
    %207 = arith.mulf %206, %203 : vector<32x256xf32>
    %208 = arith.select %205, %203, %207 : vector<32x256xi1>, vector<32x256xf32>
    %cst_60 = arith.constant -1.000000e+30 : f32
    %209 = vector.broadcast %cst_60 : f32 to vector<32x256xf32>
    %210 = arith.select %141, %208, %209 : vector<32x256xi1>, vector<32x256xf32>
    %cst_61 = arith.constant dense<0xFF800000> : vector<32xf32>
    %211 = vector.multi_reduction <maximumf>, %210, %cst_61 [1] : vector<32x256xf32> to vector<32xf32>
    %212 = vector.shape_cast %211 : vector<32xf32> to vector<32x1xf32>
    %213 = vector.broadcast %212 : vector<32x1xf32> to vector<32x256xf32>
    %214 = arith.subf %210, %213 : vector<32x256xf32>
    %215 = math.exp %214 : vector<32x256xf32>
    %216 = arith.mulf %215, %139 : vector<32x256xf32>
    %217 = vector.extract_strided_slice %137 {offsets = [2, 0], sizes = [1, 256], strides = [1, 1]} : vector<8x256xf32> to vector<1x256xf32>
    %218 = vector.broadcast %217 : vector<1x256xf32> to vector<32x256xf32>
    %219 = arith.mulf %216, %218 : vector<32x256xf32>
    %cst_62 = arith.constant dense<0.000000e+00> : vector<32xf32>
    %220 = vector.multi_reduction <add>, %219, %cst_62 [1] : vector<32x256xf32> to vector<32xf32>
    %221 = vector.shape_cast %220 : vector<32xf32> to vector<32x1xf32>
    %cst_63 = arith.constant dense<0.000000e+00> : vector<32xf32>
    %222 = vector.multi_reduction <add>, %216, %cst_63 [1] : vector<32x256xf32> to vector<32xf32>
    %223 = vector.shape_cast %222 : vector<32xf32> to vector<32x1xf32>
    %224 = tpu.reciprocal %223 {approx = true} : vector<32x1xf32> -> vector<32x1xf32>
    %225 = arith.mulf %221, %224 : vector<32x1xf32>
    %226 = arith.addf %198, %225 : vector<32x1xf32>
    %227 = vector.extract_strided_slice %130 {offsets = [0, 3], sizes = [32, 1], strides = [1, 1]} : vector<32x4xf32> to vector<32x1xf32>
    %228 = vector.extract_strided_slice %137 {offsets = [7, 0], sizes = [1, 256], strides = [1, 1]} : vector<8x256xf32> to vector<1x256xf32>
    %229 = vector.broadcast %227 : vector<32x1xf32> to vector<32x256xf32>
    %230 = vector.broadcast %228 : vector<1x256xf32> to vector<32x256xf32>
    %231 = arith.addf %229, %230 : vector<32x256xf32>
    %cst_64 = arith.constant 0.000000e+00 : f32
    %232 = vector.broadcast %cst_64 : f32 to vector<32x256xf32>
    %233 = arith.cmpf oge, %231, %232 : vector<32x256xf32>
    %cst_65 = arith.constant 2.000000e-01 : f32
    %234 = vector.broadcast %cst_65 : f32 to vector<32x256xf32>
    %235 = arith.mulf %234, %231 : vector<32x256xf32>
    %236 = arith.select %233, %231, %235 : vector<32x256xi1>, vector<32x256xf32>
    %cst_66 = arith.constant -1.000000e+30 : f32
    %237 = vector.broadcast %cst_66 : f32 to vector<32x256xf32>
    %238 = arith.select %141, %236, %237 : vector<32x256xi1>, vector<32x256xf32>
    %cst_67 = arith.constant dense<0xFF800000> : vector<32xf32>
    %239 = vector.multi_reduction <maximumf>, %238, %cst_67 [1] : vector<32x256xf32> to vector<32xf32>
    %240 = vector.shape_cast %239 : vector<32xf32> to vector<32x1xf32>
    %241 = vector.broadcast %240 : vector<32x1xf32> to vector<32x256xf32>
    %242 = arith.subf %238, %241 : vector<32x256xf32>
    %243 = math.exp %242 : vector<32x256xf32>
    %244 = arith.mulf %243, %139 : vector<32x256xf32>
    %245 = vector.extract_strided_slice %137 {offsets = [3, 0], sizes = [1, 256], strides = [1, 1]} : vector<8x256xf32> to vector<1x256xf32>
    %246 = vector.broadcast %245 : vector<1x256xf32> to vector<32x256xf32>
    %247 = arith.mulf %244, %246 : vector<32x256xf32>
    %cst_68 = arith.constant dense<0.000000e+00> : vector<32xf32>
    %248 = vector.multi_reduction <add>, %247, %cst_68 [1] : vector<32x256xf32> to vector<32xf32>
    %249 = vector.shape_cast %248 : vector<32xf32> to vector<32x1xf32>
    %cst_69 = arith.constant dense<0.000000e+00> : vector<32xf32>
    %250 = vector.multi_reduction <add>, %244, %cst_69 [1] : vector<32x256xf32> to vector<32xf32>
    %251 = vector.shape_cast %250 : vector<32xf32> to vector<32x1xf32>
    %252 = tpu.reciprocal %251 {approx = true} : vector<32x1xf32> -> vector<32x1xf32>
    %253 = arith.mulf %249, %252 : vector<32x1xf32>
    %254 = arith.addf %226, %253 : vector<32x1xf32>
    %255 = arith.addf %127, %254 : vector<32x1xf32>
    %c0_70 = arith.constant 0 : index
    %c0_71 = arith.constant 0 : index
    %256 = vector.load %arg10[%c0_70, %c0_71] : memref<1x1xf32, #tpu.memory_space<vmem>>, vector<1x1xf32>
    %257 = vector.broadcast %256 : vector<1x1xf32> to vector<32x1xf32>
    %258 = arith.addf %255, %257 : vector<32x1xf32>
    %c0_72 = arith.constant 0 : index
    %c0_73 = arith.constant 0 : index
    %259 = vector.load %arg11[%c0_72, %c0_73] : memref<32x1xf32, #tpu.memory_space<vmem>>, vector<32x1xf32>
    tpu.vector_store %arg11[%c0_72, %c0_73], %258 {strides = array<i32>} : memref<32x1xf32, #tpu.memory_space<vmem>>, vector<32x1xf32>,
    return
  }
  func.func @transform_0(%arg0: i32) -> (i32, i32) {
    %c0_i32 = arith.constant 0 : i32
    %c0_i32_0 = arith.constant 0 : i32
    return %c0_i32, %arg0 : i32, i32
  }
  func.func @transform_1(%arg0: i32) -> (i32, i32) {
    %c0_i32 = arith.constant 0 : i32
    %c0_i32_0 = arith.constant 0 : i32
    return %c0_i32, %arg0 : i32, i32
  }
  func.func @transform_2(%arg0: i32) -> (i32, i32) {
    %c0_i32 = arith.constant 0 : i32
    %c0_i32_0 = arith.constant 0 : i32
    return %arg0, %c0_i32 : i32, i32
  }
  func.func @transform_3(%arg0: i32) -> (i32, i32) {
    %c0_i32 = arith.constant 0 : i32
    %c0_i32_0 = arith.constant 0 : i32
    return %c0_i32, %arg0 : i32, i32
  }
  func.func @transform_4(%arg0: i32) -> (i32, i32) {
    %c0_i32 = arith.constant 0 : i32
    %c0_i32_0 = arith.constant 0 : i32
    return %c0_i32, %arg0 : i32, i32
  }
  func.func @transform_5(%arg0: i32) -> (i32, i32) {
    %c0_i32 = arith.constant 0 : i32
    %c0_i32_0 = arith.constant 0 : i32
    return %arg0, %c0_i32 : i32, i32
  }
  func.func @transform_6(%arg0: i32) -> (i32, i32) {
    %c0_i32 = arith.constant 0 : i32
    %c0_i32_0 = arith.constant 0 : i32
    %c0_i32_1 = arith.constant 0 : i32
    return %c0_i32, %c0_i32_0 : i32, i32
  }
  func.func @transform_7(%arg0: i32) -> (i32, i32) {
    %c0_i32 = arith.constant 0 : i32
    %c0_i32_0 = arith.constant 0 : i32
    %c0_i32_1 = arith.constant 0 : i32
    return %c0_i32, %c0_i32_0 : i32, i32
  }
  func.func @transform_8(%arg0: i32) -> (i32, i32) {
    %c0_i32 = arith.constant 0 : i32
    %c0_i32_0 = arith.constant 0 : i32
    %c0_i32_1 = arith.constant 0 : i32
    return %c0_i32, %c0_i32_0 : i32, i32
  }
  func.func @transform_9(%arg0: i32) -> (i32, i32) {
    %c0_i32 = arith.constant 0 : i32
    %c0_i32_0 = arith.constant 0 : i32
    %c0_i32_1 = arith.constant 0 : i32
    return %c0_i32, %c0_i32_0 : i32, i32
  }
  func.func @transform_10(%arg0: i32) -> (i32, i32) {
    %c0_i32 = arith.constant 0 : i32
    %c0_i32_0 = arith.constant 0 : i32
    return %arg0, %c0_i32 : i32, i32
  }
}

</mosaic_0001>

<llo_original>
// kernel: tpu_custom_call.1
$region0: #{tpu_custom_call.1}
  #allocation0 [shape = 'u32[]', space=smem, size = 0x4, offset = 0x4, fixed_abs, tag = 'smem constant byte address 0x4 - core index']
  #allocation1 [shape = 'u32[72,128]{1,0:T(1,128)}', space=vmem, size = 0x9000, scoped, tag = 'internal scratch']
  #allocation2 [shape = 'f32[1,1]{1,0:T(1,128)S(1)}', space=vmem, size = 0x200, scoped, tag = 'scoped memory for tpu_custom_call.1']
  %s0 = inlined_call_operand.hbm [shape: s32[1,256], index: 0, kind: input, shape index: {}]
  %s1 = inlined_call_operand.hbm [shape: f32[1,256], index: 1, kind: input, shape index: {}]
  %s2 = inlined_call_operand.vmem [shape: f32[32,4], index: 2, kind: input, shape index: {}]
  %s3 = inlined_call_operand.hbm [shape: s32[1,256], index: 3, kind: input, shape index: {}]
  %s4 = inlined_call_operand.hbm [shape: f32[1,256], index: 4, kind: input, shape index: {}]
  %s5 = inlined_call_operand.vmem [shape: f32[32,4], index: 5, kind: input, shape index: {}]
  %s6 = inlined_call_operand.vmem [shape: f32[8,128], index: 6, kind: input, shape index: {}]
  %s7 = inlined_call_operand.hbm [shape: f32[8,128], index: 7, kind: input, shape index: {}]
  %s8 = inlined_call_operand.vmem [shape: f32[32,256], index: 8, kind: input, shape index: {}]
  %s9 = inlined_call_operand.<no memory space> [shape: f32[1,1], index: 9, kind: input, shape index: {}]
  %s10 = inlined_call_operand.vmem [shape: f32[32,1], index: 10, kind: output, shape index: {}]
  %s11 = sld [smem:[#allocation0]]
  $region70: #{tpu_custom_call.1} parent=0
    _
  %s13 = ssub.s32 1, %s11
  %s14 = scalar_select 0, %s13, %s11
  %v15 = vstv %s9
  %16 = vst [vmem:[#allocation2] sm:$0x1] %v15
  $region1: #{tpu_custom_call.1} parent=0
    #allocation3 [shape = 'u8[1024]{0}', space=vmem, size = 0x400, scoped, tag = 'input window, operand 0, single buffered']
    #allocation4 [shape = 's32[1]{0}', space=sflag, size = 0x4, scoped, tag = 'scoped memory for tpu_custom_call.1']
    #allocation5 [shape = 'u8[1024]{0}', space=vmem, size = 0x400, scoped, tag = 'input window, operand 1, single buffered']
    #allocation6 [shape = 's32[1]{0}', space=sflag, size = 0x4, scoped, tag = 'scoped memory for tpu_custom_call.1']
    #allocation7 [shape = 'u8[1024]{0}', space=vmem, size = 0x400, scoped, tag = 'input window, operand 3, single buffered']
    #allocation8 [shape = 'u8[1024]{0}', space=vmem, size = 0x400, scoped, tag = 'input window, operand 4, single buffered']
    #allocation9 [shape = 's32[1]{0}', space=sflag, size = 0x4, scoped, tag = 'scoped memory for tpu_custom_call.1']
    #allocation10 [shape = 'u8[4096]{0}', space=vmem, size = 0x1000, scoped, tag = 'input window, operand 7, single buffered']
    %17 = vsyncpa [#allocation4], 0
    %18 = vsyncpa [#allocation6], 0
    %19 = vsyncpa [#allocation9], 0
    // Predicated region
    $region2: #{tpu_custom_call.1} parent=1 // pred_check
      _
    $region3: #{tpu_custom_call.1} parent=1 // pred_check_branch
      %21 = sbr.rel (0) target = $region5
    $region4: #{tpu_custom_call.1} parent=1 // pred_region
      %23 = vsyncadd [#allocation4], 0
      %s25 = sshll.u32 %s0, 4
      %s26 = int_to_ptr.hbm [resolvable:$true] %s25
      %s27 = sshll.u32 [#allocation3], 4
      %s28 = int_to_ptr.vmem [resolvable:$true] %s27
      %30 = dma.hbm_to_vmem [thread:$0]  %s26, 32, %s28, [#allocation4]
    $region5: #{tpu_custom_call.1} parent=1 // pred_fallthru
      _
    // Predicated region
    $region6: #{tpu_custom_call.1} parent=1 // pred_check
      _
    $region7: #{tpu_custom_call.1} parent=1 // pred_check_branch
      %32 = sbr.rel (0) target = $region9
    $region8: #{tpu_custom_call.1} parent=1 // pred_region
      %34 = vsyncadd [#allocation6], 0
      %s36 = sshll.u32 %s1, 4
      %s37 = int_to_ptr.hbm [resolvable:$true] %s36
      %s38 = sshll.u32 [#allocation5], 4
      %s39 = int_to_ptr.vmem [resolvable:$true] %s38
      %41 = dma.hbm_to_vmem [thread:$0]  %s37, 32, %s39, [#allocation6]
    $region9: #{tpu_custom_call.1} parent=1 // pred_fallthru
      _
    // Predicated region
    $region10: #{tpu_custom_call.1} parent=1 // pred_check
      _
    $region11: #{tpu_custom_call.1} parent=1 // pred_check_branch
      %43 = sbr.rel (0) target = $region13
    $region12: #{tpu_custom_call.1} parent=1 // pred_region
      _
    $region13: #{tpu_custom_call.1} parent=1 // pred_fallthru
      _
    // Predicated region
    $region14: #{tpu_custom_call.1} parent=1 // pred_check
      _
    $region15: #{tpu_custom_call.1} parent=1 // pred_check_branch
      %45 = sbr.rel (0) target = $region17
    $region16: #{tpu_custom_call.1} parent=1 // pred_region
      %47 = vsyncadd [#allocation6], 0
      %s49 = sshll.u32 %s3, 4
      %s50 = int_to_ptr.hbm [resolvable:$true] %s49
      %s51 = sshll.u32 [#allocation7], 4
      %s52 = int_to_ptr.vmem [resolvable:$true] %s51
      %54 = dma.hbm_to_vmem [thread:$0]  %s50, 32, %s52, [#allocation6]
    $region17: #{tpu_custom_call.1} parent=1 // pred_fallthru
      _
    // Predicated region
    $region18: #{tpu_custom_call.1} parent=1 // pred_check
      _
    $region19: #{tpu_custom_call.1} parent=1 // pred_check_branch
      %56 = sbr.rel (0) target = $region21
    $region20: #{tpu_custom_call.1} parent=1 // pred_region
      %58 = vsyncadd [#allocation9], 0
      %s60 = sshll.u32 %s4, 4
      %s61 = int_to_ptr.hbm [resolvable:$true] %s60
      %s62 = sshll.u32 [#allocation8], 4
      %s63 = int_to_ptr.vmem [resolvable:$true] %s62
      %65 = dma.hbm_to_vmem [thread:$0]  %s61, 32, %s63, [#allocation9]
    $region21: #{tpu_custom_call.1} parent=1 // pred_fallthru
      _
    // Predicated region
    $region22: #{tpu_custom_call.1} parent=1 // pred_check
      _
    $region23: #{tpu_custom_call.1} parent=1 // pred_check_branch
      %67 = sbr.rel (0) target = $region25
    $region24: #{tpu_custom_call.1} parent=1 // pred_region
      _
    $region25: #{tpu_custom_call.1} parent=1 // pred_fallthru
      _
    // Predicated region
    $region26: #{tpu_custom_call.1} parent=1 // pred_check
      _
    $region27: #{tpu_custom_call.1} parent=1 // pred_check_branch
      %69 = sbr.rel (0) target = $region29
    $region28: #{tpu_custom_call.1} parent=1 // pred_region
      _
    $region29: #{tpu_custom_call.1} parent=1 // pred_fallthru
      _
    // Predicated region
    $region30: #{tpu_custom_call.1} parent=1 // pred_check
      _
    $region31: #{tpu_custom_call.1} parent=1 // pred_check_branch
      %71 = sbr.rel (0) target = $region33
    $region32: #{tpu_custom_call.1} parent=1 // pred_region
      %73 = vsyncadd [#allocation9], 0
      %s75 = sshll.u32 %s7, 4
      %s76 = int_to_ptr.hbm [resolvable:$true] %s75
      %s77 = sshll.u32 [#allocation10], 4
      %s78 = int_to_ptr.vmem [resolvable:$true] %s77
      %80 = dma.hbm_to_vmem [thread:$0]  %s76, 128, %s78, [#allocation9]
    $region33: #{tpu_custom_call.1} parent=1 // pred_fallthru
      _
    // Predicated region
    $region34: #{tpu_custom_call.1} parent=1 // pred_check
      _
    $region35: #{tpu_custom_call.1} parent=1 // pred_check_branch
      %82 = sbr.rel (0) target = $region37
    $region36: #{tpu_custom_call.1} parent=1 // pred_region
      _
    $region37: #{tpu_custom_call.1} parent=1 // pred_fallthru
      _
    // Predicated region
    $region38: #{tpu_custom_call.1} parent=1 // pred_check
      _
    $region39: #{tpu_custom_call.1} parent=1 // pred_check_branch
      %84 = sbr.rel (0) target = $region41
    $region40: #{tpu_custom_call.1} parent=1 // pred_region
      _
    $region41: #{tpu_custom_call.1} parent=1 // pred_fallthru
      _
    // Predicated region
    $region42: #{tpu_custom_call.1} parent=1 // pred_check
      _
    $region43: #{tpu_custom_call.1} parent=1 // pred_check_branch
      %86 = sbr.rel (0) target = $region45
    $region44: #{tpu_custom_call.1} parent=1 // pred_region
      %88 = dma.done [#allocation4], 32
    $region45: #{tpu_custom_call.1} parent=1 // pred_fallthru
      _
    // Predicated region
    $region46: #{tpu_custom_call.1} parent=1 // pred_check
      _
    $region47: #{tpu_custom_call.1} parent=1 // pred_check_branch
      %90 = sbr.rel (0) target = $region49
    $region48: #{tpu_custom_call.1} parent=1 // pred_region
      %92 = dma.done [#allocation6], 32
    $region49: #{tpu_custom_call.1} parent=1 // pred_fallthru
      _
    // Predicated region
    $region50: #{tpu_custom_call.1} parent=1 // pred_check
      _
    $region51: #{tpu_custom_call.1} parent=1 // pred_check_branch
      %94 = sbr.rel (0) target = $region53
    $region52: #{tpu_custom_call.1} parent=1 // pred_region
      %96 = dma.done [#allocation6], 32
    $region53: #{tpu_custom_call.1} parent=1 // pred_fallthru
      _
    // Predicated region
    $region54: #{tpu_custom_call.1} parent=1 // pred_check
      _
    $region55: #{tpu_custom_call.1} parent=1 // pred_check_branch
      %98 = sbr.rel (0) target = $region57
    $region56: #{tpu_custom_call.1} parent=1 // pred_region
      %100 = dma.done [#allocation9], 32
    $region57: #{tpu_custom_call.1} parent=1 // pred_fallthru
      _
    // Predicated region
    $region58: #{tpu_custom_call.1} parent=1 // pred_check
      _
    $region59: #{tpu_custom_call.1} parent=1 // pred_check_branch
      %102 = sbr.rel (0) target = $region61
    $region60: #{tpu_custom_call.1} parent=1 // pred_region
      %104 = dma.done [#allocation9], 128
    $region61: #{tpu_custom_call.1} parent=1 // pred_fallthru
      _
    %v105 = vld [vmem:[%s8] sm:$0xff]
    %v106 = vld [vmem:[%s8 + $0x8] sm:$0xff]
    %v107 = vld [vmem:[%s8 + $0x10] sm:$0xff]
    %v108 = vld [vmem:[%s8 + $0x18] sm:$0xff]
    %v109 = vld [vmem:[%s8 + $0x20] sm:$0xff]
    %v110 = vld [vmem:[%s8 + $0x28] sm:$0xff]
    %v111 = vld [vmem:[%s8 + $0x30] sm:$0xff]
    %v112 = vld [vmem:[%s8 + $0x38] sm:$0xff]
    %v113 = vld [vmem:[#allocation3] sm:$0x3]
    %v114 = vld [vmem:[#allocation5] sm:$0x3]
    %v115 = vld [vmem:[%s2] sm:$0xff]
    %v116 = vld [vmem:[%s2 + $0x8] sm:$0xff]
    %v117 = vld [vmem:[%s2 + $0x10] sm:$0xff]
    %v118 = vld [vmem:[%s2 + $0x18] sm:$0xff]
    %v119 = vld [vmem:[%s6] sm:$0xff]
    %v120 = vlaneseq
    %v121 = vshrl.u32 %v120, 7
    %v122 = vadd.s32 %v121, 8
    %v123 = vadd.s32 %v121, 16
    %v124 = vadd.s32 %v121, 24
    %v125 = vadd.s32 %v121, 32
    %v126 = vadd.s32 %v121, 40
    %v127 = vadd.s32 %v121, 48
    %v128 = vadd.s32 %v121, 56
    %v129 = vadd.s32 %v121, 64
    %v130 = vadd.s32 %v121, 72
    %v131 = vadd.s32 %v121, 80
    %v132 = vadd.s32 %v121, 88
    %v133 = vadd.s32 %v121, 96
    %v134 = vadd.s32 %v121, 104
    %v135 = vadd.s32 %v121, 112
    %v136 = vadd.s32 %v121, 120
    %v137 = vperm.slane %v113, 0
    %v138 = vperm.slane %v113, 1
    %vm139 = vcmp.eq.s32.totalorder %v121, %v137
    %vm140 = vcmp.eq.s32.totalorder %v121, %v138
    %vm141 = vcmp.eq.s32.totalorder %v122, %v137
    %vm142 = vcmp.eq.s32.totalorder %v122, %v138
    %vm143 = vcmp.eq.s32.totalorder %v123, %v137
    %vm144 = vcmp.eq.s32.totalorder %v123, %v138
    %vm145 = vcmp.eq.s32.totalorder %v124, %v137
    %vm146 = vcmp.eq.s32.totalorder %v124, %v138
    %vm147 = vcmp.eq.s32.totalorder %v125, %v137
    %vm148 = vcmp.eq.s32.totalorder %v125, %v138
    %vm149 = vcmp.eq.s32.totalorder %v126, %v137
    %vm150 = vcmp.eq.s32.totalorder %v126, %v138
    %vm151 = vcmp.eq.s32.totalorder %v127, %v137
    %vm152 = vcmp.eq.s32.totalorder %v127, %v138
    %vm153 = vcmp.eq.s32.totalorder %v128, %v137
    %vm154 = vcmp.eq.s32.totalorder %v128, %v138
    %vm155 = vcmp.eq.s32.totalorder %v129, %v137
    %vm156 = vcmp.eq.s32.totalorder %v129, %v138
    %vm157 = vcmp.eq.s32.totalorder %v130, %v137
    %vm158 = vcmp.eq.s32.totalorder %v130, %v138
    %vm159 = vcmp.eq.s32.totalorder %v131, %v137
    %vm160 = vcmp.eq.s32.totalorder %v131, %v138
    %vm161 = vcmp.eq.s32.totalorder %v132, %v137
    %vm162 = vcmp.eq.s32.totalorder %v132, %v138
    %vm163 = vcmp.eq.s32.totalorder %v133, %v137
    %vm164 = vcmp.eq.s32.totalorder %v133, %v138
    %vm165 = vcmp.eq.s32.totalorder %v134, %v137
    %vm166 = vcmp.eq.s32.totalorder %v134, %v138
    %vm167 = vcmp.eq.s32.totalorder %v135, %v137
    %vm168 = vcmp.eq.s32.totalorder %v135, %v138
    %vm169 = vcmp.eq.s32.totalorder %v136, %v137
    %vm170 = vcmp.eq.s32.totalorder %v136, %v138
    %v171 = vsel %vm139, 1, 0
    %v172 = vsel %vm140, 1, 0
    %v173 = vsel %vm141, 1, 0
    %v174 = vsel %vm142, 1, 0
    %v175 = vsel %vm143, 1, 0
    %v176 = vsel %vm144, 1, 0
    %v177 = vsel %vm145, 1, 0
    %v178 = vsel %vm146, 1, 0
    %v179 = vsel %vm147, 1, 0
    %v180 = vsel %vm148, 1, 0
    %v181 = vsel %vm149, 1, 0
    %v182 = vsel %vm150, 1, 0
    %v183 = vsel %vm151, 1, 0
    %v184 = vsel %vm152, 1, 0
    %v185 = vsel %vm153, 1, 0
    %v186 = vsel %vm154, 1, 0
    %v187 = vsel %vm155, 1, 0
    %v188 = vsel %vm156, 1, 0
    %v189 = vsel %vm157, 1, 0
    %v190 = vsel %vm158, 1, 0
    %v191 = vsel %vm159, 1, 0
    %v192 = vsel %vm160, 1, 0
    %v193 = vsel %vm161, 1, 0
    %v194 = vsel %vm162, 1, 0
    %v195 = vsel %vm163, 1, 0
    %v196 = vsel %vm164, 1, 0
    %v197 = vsel %vm165, 1, 0
    %v198 = vsel %vm166, 1, 0
    %v199 = vsel %vm167, 1, 0
    %v200 = vsel %vm168, 1, 0
    %v201 = vsel %vm169, 1, 0
    %v202 = vsel %vm170, 1, 0
    %v203 = vcvt.s32.f32 %v171
    %v204 = vcvt.s32.f32 %v172
    %v205 = vcvt.s32.f32 %v173
    %v206 = vcvt.s32.f32 %v174
    %v207 = vcvt.s32.f32 %v175
    %v208 = vcvt.s32.f32 %v176
    %v209 = vcvt.s32.f32 %v177
    %v210 = vcvt.s32.f32 %v178
    %v211 = vcvt.s32.f32 %v179
    %v212 = vcvt.s32.f32 %v180
    %v213 = vcvt.s32.f32 %v181
    %v214 = vcvt.s32.f32 %v182
    %v215 = vcvt.s32.f32 %v183
    %v216 = vcvt.s32.f32 %v184
    %v217 = vcvt.s32.f32 %v185
    %v218 = vcvt.s32.f32 %v186
    %v219 = vcvt.s32.f32 %v187
    %v220 = vcvt.s32.f32 %v188
    %v221 = vcvt.s32.f32 %v189
    %v222 = vcvt.s32.f32 %v190
    %v223 = vcvt.s32.f32 %v191
    %v224 = vcvt.s32.f32 %v192
    %v225 = vcvt.s32.f32 %v193
    %v226 = vcvt.s32.f32 %v194
    %v227 = vcvt.s32.f32 %v195
    %v228 = vcvt.s32.f32 %v196
    %v229 = vcvt.s32.f32 %v197
    %v230 = vcvt.s32.f32 %v198
    %v231 = vcvt.s32.f32 %v199
    %v232 = vcvt.s32.f32 %v200
    %v233 = vcvt.s32.f32 %v201
    %v234 = vcvt.s32.f32 %v202
    %235 = vmatpush.msra.mxu0 %v233
    %236 = vmatpush.msra.mxu0 %v231
    %237 = vmatpush.msra.mxu0 %v229
    %238 = vmatpush.msra.mxu0 %v227
    %239 = vmatpush.msra.mxu0 %v225
    %240 = vmatpush.msra.mxu0 %v223
    %241 = vmatpush.msra.mxu0 %v221
    %242 = vmatpush.msra.mxu0 %v219
    %243 = vmatpush.msra.mxu0 %v217
    %244 = vmatpush.msra.mxu0 %v215
    %245 = vmatpush.msra.mxu0 %v213
    %246 = vmatpush.msra.mxu0 %v211
    %247 = vmatpush.msra.mxu0 %v209
    %248 = vmatpush.msra.mxu0 %v207
    %249 = vmatpush.msra.mxu0 %v205
    %250 = vmatpush.msra.mxu0 %v203
    %251 = vmatmul.f32.gmra.mxu0 %v119
    %v252 = vpop.f32.mrf.mxu0
    %v253 = vadd.f32 0.0, %v252
    %254 = vdwg.mxu0
    %255 = vmatpush.msra.mxu0 %v234
    %256 = vmatpush.msra.mxu0 %v232
    %257 = vmatpush.msra.mxu0 %v230
    %258 = vmatpush.msra.mxu0 %v228
    %259 = vmatpush.msra.mxu0 %v226
    %260 = vmatpush.msra.mxu0 %v224
    %261 = vmatpush.msra.mxu0 %v222
    %262 = vmatpush.msra.mxu0 %v220
    %263 = vmatpush.msra.mxu0 %v218
    %264 = vmatpush.msra.mxu0 %v216
    %265 = vmatpush.msra.mxu0 %v214
    %266 = vmatpush.msra.mxu0 %v212
    %267 = vmatpush.msra.mxu0 %v210
    %268 = vmatpush.msra.mxu0 %v208
    %269 = vmatpush.msra.mxu0 %v206
    %270 = vmatpush.msra.mxu0 %v204
    %271 = vmatmul.f32.gmra.mxu0 %v119
    %v272 = vpop.f32.mrf.mxu0
    %v273 = vadd.f32 0.0, %v272
    %274 = vdwg.mxu0
    %v276 = vperm.slane %v114, 0
    %v277 = vperm.slane %v114, 1
    %v280 = vmul.f32 %v276, %v105
    %v281 = vmul.f32 %v277, %v106
    %v282 = vmul.f32 %v276, %v107
    %v283 = vmul.f32 %v277, %v108
    %v284 = vmul.f32 %v276, %v109
    %v285 = vmul.f32 %v277, %v110
    %v286 = vmul.f32 %v276, %v111
    %v287 = vmul.f32 %v277, %v112
    %vm288 = vcmp.gt.f32.partialorder %v280, 0.0
    %vm289 = vcmp.gt.f32.partialorder %v281, 0.0
    %vm290 = vcmp.gt.f32.partialorder %v282, 0.0
    %vm291 = vcmp.gt.f32.partialorder %v283, 0.0
    %vm292 = vcmp.gt.f32.partialorder %v284, 0.0
    %vm293 = vcmp.gt.f32.partialorder %v285, 0.0
    %vm294 = vcmp.gt.f32.partialorder %v286, 0.0
    %vm295 = vcmp.gt.f32.partialorder %v287, 0.0
    %297 = vset.pattern.permute.xlu0 0
    %298 = vperm.xlu0 %297, %v115
    %v299 = vpop.permute.xlu0 %298
    %302 = vset.pattern.permute.xlu0 0
    %303 = vperm.xlu0 %302, %v116
    %v304 = vpop.permute.xlu0 %303
    %307 = vset.pattern.permute.xlu0 0
    %308 = vperm.xlu0 %307, %v117
    %v309 = vpop.permute.xlu0 %308
    %312 = vset.pattern.permute.xlu0 0
    %313 = vperm.xlu0 %312, %v118
    %v314 = vpop.permute.xlu0 %313
    %v316 = vperm.slane %v253, 4
    %v317 = vperm.slane %v273, 4
    %v318 = vadd.f32 %v299, %v316
    %v319 = vadd.f32 %v299, %v317
    %v320 = vadd.f32 %v304, %v316
    %v321 = vadd.f32 %v304, %v317
    %v322 = vadd.f32 %v309, %v316
    %v323 = vadd.f32 %v309, %v317
    %v324 = vadd.f32 %v314, %v316
    %v325 = vadd.f32 %v314, %v317
    %vm326 = vcmp.ge.f32.partialorder %v318, 0.0
    %vm327 = vcmp.ge.f32.partialorder %v319, 0.0
    %vm328 = vcmp.ge.f32.partialorder %v320, 0.0
    %vm329 = vcmp.ge.f32.partialorder %v321, 0.0
    %vm330 = vcmp.ge.f32.partialorder %v322, 0.0
    %vm331 = vcmp.ge.f32.partialorder %v323, 0.0
    %vm332 = vcmp.ge.f32.partialorder %v324, 0.0
    %vm333 = vcmp.ge.f32.partialorder %v325, 0.0
    %v334 = vmul.f32 %v318, 0.2
    %v335 = vmul.f32 %v319, 0.2
    %v336 = vmul.f32 %v320, 0.2
    %v337 = vmul.f32 %v321, 0.2
    %v338 = vmul.f32 %v322, 0.2
    %v339 = vmul.f32 %v323, 0.2
    %v340 = vmul.f32 %v324, 0.2
    %v341 = vmul.f32 %v325, 0.2
    %v342 = vsel %vm326, %v318, %v334
    %v343 = vsel %vm327, %v319, %v335
    %v344 = vsel %vm328, %v320, %v336
    %v345 = vsel %vm329, %v321, %v337
    %v346 = vsel %vm330, %v322, %v338
    %v347 = vsel %vm331, %v323, %v339
    %v348 = vsel %vm332, %v324, %v340
    %v349 = vsel %vm333, %v325, %v341
    %v350 = vsel %vm288, %v342, -1e+30
    %v351 = vsel %vm289, %v343, -1e+30
    %v352 = vsel %vm290, %v344, -1e+30
    %v353 = vsel %vm291, %v345, -1e+30
    %v354 = vsel %vm292, %v346, -1e+30
    %v355 = vsel %vm293, %v347, -1e+30
    %v356 = vsel %vm294, %v348, -1e+30
    %v357 = vsel %vm295, %v349, -1e+30
    %v358 = vmax.f32 %v350, %v351
    %359 = vmax.xlane.f32.xlu0 %v358
    %v360 = vpop.xlane.xlu0 %359
    %v361 = vmax.f32 %v352, %v353
    %362 = vmax.xlane.f32.xlu0 %v361
    %v363 = vpop.xlane.xlu0 %362
    %v364 = vmax.f32 %v354, %v355
    %365 = vmax.xlane.f32.xlu0 %v364
    %v366 = vpop.xlane.xlu0 %365
    %v367 = vmax.f32 %v356, %v357
    %368 = vmax.xlane.f32.xlu0 %v367
    %v369 = vpop.xlane.xlu0 %368
    %v370 = vsub.f32 %v350, %v360
    %v371 = vsub.f32 %v351, %v360
    %v372 = vsub.f32 %v352, %v363
    %v373 = vsub.f32 %v353, %v363
    %v374 = vsub.f32 %v354, %v366
    %v375 = vsub.f32 %v355, %v366
    %v376 = vsub.f32 %v356, %v369
    %v377 = vsub.f32 %v357, %v369
    %v378 = vmul.f32 %v370, 1.442695
    %v379 = vpow.pop %v378
    %v380 = vmul.f32 %v371, 1.442695
    %v381 = vpow.pop %v380
    %v382 = vmul.f32 %v372, 1.442695
    %v383 = vpow.pop %v382
    %v384 = vmul.f32 %v373, 1.442695
    %v385 = vpow.pop %v384
    %v386 = vmul.f32 %v374, 1.442695
    %v387 = vpow.pop %v386
    %v388 = vmul.f32 %v375, 1.442695
    %v389 = vpow.pop %v388
    %v390 = vmul.f32 %v376, 1.442695
    %v391 = vpow.pop %v390
    %v392 = vmul.f32 %v377, 1.442695
    %v393 = vpow.pop %v392
    %v394 = vmul.f32 %v379, %v280
    %v395 = vmul.f32 %v381, %v281
    %v396 = vmul.f32 %v383, %v282
    %v397 = vmul.f32 %v385, %v283
    %v398 = vmul.f32 %v387, %v284
    %v399 = vmul.f32 %v389, %v285
    %v400 = vmul.f32 %v391, %v286
    %v401 = vmul.f32 %v393, %v287
    %v402 = vperm.slane %v253, 0
    %v403 = vperm.slane %v273, 0
    %v404 = vmul.f32 %v394, %v402
    %v405 = vmul.f32 %v395, %v403
    %v406 = vmul.f32 %v396, %v402
    %v407 = vmul.f32 %v397, %v403
    %v408 = vmul.f32 %v398, %v402
    %v409 = vmul.f32 %v399, %v403
    %v410 = vmul.f32 %v400, %v402
    %v411 = vmul.f32 %v401, %v403
    %v412 = vadd.f32 %v404, %v405
    %413 = vadd.xlane.f32.xlu0 %v412
    %v414 = vpop.xlane.xlu0 %413
    %v415 = vadd.f32 %v406, %v407
    %416 = vadd.xlane.f32.xlu0 %v415
    %v417 = vpop.xlane.xlu0 %416
    %v418 = vadd.f32 %v408, %v409
    %419 = vadd.xlane.f32.xlu0 %v418
    %v420 = vpop.xlane.xlu0 %419
    %v421 = vadd.f32 %v410, %v411
    %422 = vadd.xlane.f32.xlu0 %v421
    %v423 = vpop.xlane.xlu0 %422
    %v424 = vadd.f32 %v394, %v395
    %425 = vadd.xlane.f32.xlu0 %v424
    %v426 = vpop.xlane.xlu0 %425
    %v427 = vadd.f32 %v396, %v397
    %428 = vadd.xlane.f32.xlu0 %v427
    %v429 = vpop.xlane.xlu0 %428
    %v430 = vadd.f32 %v398, %v399
    %431 = vadd.xlane.f32.xlu0 %v430
    %v432 = vpop.xlane.xlu0 %431
    %v433 = vadd.f32 %v400, %v401
    %434 = vadd.xlane.f32.xlu0 %v433
    %v435 = vpop.xlane.xlu0 %434
    %v436 = vrcp.pop %v426
    %v437 = vrcp.pop %v429
    %v438 = vrcp.pop %v432
    %v439 = vrcp.pop %v435
    %v440 = vmul.f32 %v414, %v436
    %v441 = vmul.f32 %v417, %v437
    %v442 = vmul.f32 %v420, %v438
    %v443 = vmul.f32 %v423, %v439
    %v444 = vadd.f32 %v440, 0.0
    %v445 = vadd.f32 %v441, 0.0
    %v446 = vadd.f32 %v442, 0.0
    %v447 = vadd.f32 %v443, 0.0
    %448 = vset.pattern.permute.xlu0 1
    %449 = vperm.xlu0 %448, %v115
    %v450 = vpop.permute.xlu0 %449
    %452 = vset.pattern.permute.xlu0 1
    %453 = vperm.xlu0 %452, %v116
    %v454 = vpop.permute.xlu0 %453
    %456 = vset.pattern.permute.xlu0 1
    %457 = vperm.xlu0 %456, %v117
    %v458 = vpop.permute.xlu0 %457
    %460 = vset.pattern.permute.xlu0 1
    %461 = vperm.xlu0 %460, %v118
    %v462 = vpop.permute.xlu0 %461
    %v464 = vperm.slane %v253, 5
    %v465 = vperm.slane %v273, 5
    %v466 = vadd.f32 %v450, %v464
    %v467 = vadd.f32 %v450, %v465
    %v468 = vadd.f32 %v454, %v464
    %v469 = vadd.f32 %v454, %v465
    %v470 = vadd.f32 %v458, %v464
    %v471 = vadd.f32 %v458, %v465
    %v472 = vadd.f32 %v462, %v464
    %v473 = vadd.f32 %v462, %v465
    %vm474 = vcmp.ge.f32.partialorder %v466, 0.0
    %vm475 = vcmp.ge.f32.partialorder %v467, 0.0
    %vm476 = vcmp.ge.f32.partialorder %v468, 0.0
    %vm477 = vcmp.ge.f32.partialorder %v469, 0.0
    %vm478 = vcmp.ge.f32.partialorder %v470, 0.0
    %vm479 = vcmp.ge.f32.partialorder %v471, 0.0
    %vm480 = vcmp.ge.f32.partialorder %v472, 0.0
    %vm481 = vcmp.ge.f32.partialorder %v473, 0.0
    %v482 = vmul.f32 %v466, 0.2
    %v483 = vmul.f32 %v467, 0.2
    %v484 = vmul.f32 %v468, 0.2
    %v485 = vmul.f32 %v469, 0.2
    %v486 = vmul.f32 %v470, 0.2
    %v487 = vmul.f32 %v471, 0.2
    %v488 = vmul.f32 %v472, 0.2
    %v489 = vmul.f32 %v473, 0.2
    %v490 = vsel %vm474, %v466, %v482
    %v491 = vsel %vm475, %v467, %v483
    %v492 = vsel %vm476, %v468, %v484
    %v493 = vsel %vm477, %v469, %v485
    %v494 = vsel %vm478, %v470, %v486
    %v495 = vsel %vm479, %v471, %v487
    %v496 = vsel %vm480, %v472, %v488
    %v497 = vsel %vm481, %v473, %v489
    %v498 = vsel %vm288, %v490, -1e+30
    %v499 = vsel %vm289, %v491, -1e+30
    %v500 = vsel %vm290, %v492, -1e+30
    %v501 = vsel %vm291, %v493, -1e+30
    %v502 = vsel %vm292, %v494, -1e+30
    %v503 = vsel %vm293, %v495, -1e+30
    %v504 = vsel %vm294, %v496, -1e+30
    %v505 = vsel %vm295, %v497, -1e+30
    %v506 = vmax.f32 %v498, %v499
    %507 = vmax.xlane.f32.xlu0 %v506
    %v508 = vpop.xlane.xlu0 %507
    %v509 = vmax.f32 %v500, %v501
    %510 = vmax.xlane.f32.xlu0 %v509
    %v511 = vpop.xlane.xlu0 %510
    %v512 = vmax.f32 %v502, %v503
    %513 = vmax.xlane.f32.xlu0 %v512
    %v514 = vpop.xlane.xlu0 %513
    %v515 = vmax.f32 %v504, %v505
    %516 = vmax.xlane.f32.xlu0 %v515
    %v517 = vpop.xlane.xlu0 %516
    %v518 = vsub.f32 %v498, %v508
    %v519 = vsub.f32 %v499, %v508
    %v520 = vsub.f32 %v500, %v511
    %v521 = vsub.f32 %v501, %v511
    %v522 = vsub.f32 %v502, %v514
    %v523 = vsub.f32 %v503, %v514
    %v524 = vsub.f32 %v504, %v517
    %v525 = vsub.f32 %v505, %v517
    %v526 = vmul.f32 %v518, 1.442695
    %v527 = vpow.pop %v526
    %v528 = vmul.f32 %v519, 1.442695
    %v529 = vpow.pop %v528
    %v530 = vmul.f32 %v520, 1.442695
    %v531 = vpow.pop %v530
    %v532 = vmul.f32 %v521, 1.442695
    %v533 = vpow.pop %v532
    %v534 = vmul.f32 %v522, 1.442695
    %v535 = vpow.pop %v534
    %v536 = vmul.f32 %v523, 1.442695
    %v537 = vpow.pop %v536
    %v538 = vmul.f32 %v524, 1.442695
    %v539 = vpow.pop %v538
    %v540 = vmul.f32 %v525, 1.442695
    %v541 = vpow.pop %v540
    %v542 = vmul.f32 %v527, %v280
    %v543 = vmul.f32 %v529, %v281
    %v544 = vmul.f32 %v531, %v282
    %v545 = vmul.f32 %v533, %v283
    %v546 = vmul.f32 %v535, %v284
    %v547 = vmul.f32 %v537, %v285
    %v548 = vmul.f32 %v539, %v286
    %v549 = vmul.f32 %v541, %v287
    %v550 = vperm.slane %v253, 1
    %v551 = vperm.slane %v273, 1
    %v552 = vmul.f32 %v542, %v550
    %v553 = vmul.f32 %v543, %v551
    %v554 = vmul.f32 %v544, %v550
    %v555 = vmul.f32 %v545, %v551
    %v556 = vmul.f32 %v546, %v550
    %v557 = vmul.f32 %v547, %v551
    %v558 = vmul.f32 %v548, %v550
    %v559 = vmul.f32 %v549, %v551
    %v560 = vadd.f32 %v552, %v553
    %561 = vadd.xlane.f32.xlu0 %v560
    %v562 = vpop.xlane.xlu0 %561
    %v563 = vadd.f32 %v554, %v555
    %564 = vadd.xlane.f32.xlu0 %v563
    %v565 = vpop.xlane.xlu0 %564
    %v566 = vadd.f32 %v556, %v557
    %567 = vadd.xlane.f32.xlu0 %v566
    %v568 = vpop.xlane.xlu0 %567
    %v569 = vadd.f32 %v558, %v559
    %570 = vadd.xlane.f32.xlu0 %v569
    %v571 = vpop.xlane.xlu0 %570
    %v572 = vadd.f32 %v542, %v543
    %573 = vadd.xlane.f32.xlu0 %v572
    %v574 = vpop.xlane.xlu0 %573
    %v575 = vadd.f32 %v544, %v545
    %576 = vadd.xlane.f32.xlu0 %v575
    %v577 = vpop.xlane.xlu0 %576
    %v578 = vadd.f32 %v546, %v547
    %579 = vadd.xlane.f32.xlu0 %v578
    %v580 = vpop.xlane.xlu0 %579
    %v581 = vadd.f32 %v548, %v549
    %582 = vadd.xlane.f32.xlu0 %v581
    %v583 = vpop.xlane.xlu0 %582
    %v584 = vrcp.pop %v574
    %v585 = vrcp.pop %v577
    %v586 = vrcp.pop %v580
    %v587 = vrcp.pop %v583
    %v588 = vmul.f32 %v562, %v584
    %v589 = vmul.f32 %v565, %v585
    %v590 = vmul.f32 %v568, %v586
    %v591 = vmul.f32 %v571, %v587
    %v592 = vadd.f32 %v444, %v588
    %v593 = vadd.f32 %v445, %v589
    %v594 = vadd.f32 %v446, %v590
    %v595 = vadd.f32 %v447, %v591
    %596 = vset.pattern.permute.xlu0 2
    %597 = vperm.xlu0 %596, %v115
    %v598 = vpop.permute.xlu0 %597
    %600 = vset.pattern.permute.xlu0 2
    %601 = vperm.xlu0 %600, %v116
    %v602 = vpop.permute.xlu0 %601
    %604 = vset.pattern.permute.xlu0 2
    %605 = vperm.xlu0 %604, %v117
    %v606 = vpop.permute.xlu0 %605
    %608 = vset.pattern.permute.xlu0 2
    %609 = vperm.xlu0 %608, %v118
    %v610 = vpop.permute.xlu0 %609
    %v612 = vperm.slane %v253, 6
    %v613 = vperm.slane %v273, 6
    %v614 = vadd.f32 %v598, %v612
    %v615 = vadd.f32 %v598, %v613
    %v616 = vadd.f32 %v602, %v612
    %v617 = vadd.f32 %v602, %v613
    %v618 = vadd.f32 %v606, %v612
    %v619 = vadd.f32 %v606, %v613
    %v620 = vadd.f32 %v610, %v612
    %v621 = vadd.f32 %v610, %v613
    %vm622 = vcmp.ge.f32.partialorder %v614, 0.0
    %vm623 = vcmp.ge.f32.partialorder %v615, 0.0
    %vm624 = vcmp.ge.f32.partialorder %v616, 0.0
    %vm625 = vcmp.ge.f32.partialorder %v617, 0.0
    %vm626 = vcmp.ge.f32.partialorder %v618, 0.0
    %vm627 = vcmp.ge.f32.partialorder %v619, 0.0
    %vm628 = vcmp.ge.f32.partialorder %v620, 0.0
    %vm629 = vcmp.ge.f32.partialorder %v621, 0.0
    %v630 = vmul.f32 %v614, 0.2
    %v631 = vmul.f32 %v615, 0.2
    %v632 = vmul.f32 %v616, 0.2
    %v633 = vmul.f32 %v617, 0.2
    %v634 = vmul.f32 %v618, 0.2
    %v635 = vmul.f32 %v619, 0.2
    %v636 = vmul.f32 %v620, 0.2
    %v637 = vmul.f32 %v621, 0.2
    %v638 = vsel %vm622, %v614, %v630
    %v639 = vsel %vm623, %v615, %v631
    %v640 = vsel %vm624, %v616, %v632
    %v641 = vsel %vm625, %v617, %v633
    %v642 = vsel %vm626, %v618, %v634
    %v643 = vsel %vm627, %v619, %v635
    %v644 = vsel %vm628, %v620, %v636
    %v645 = vsel %vm629, %v621, %v637
    %v646 = vsel %vm288, %v638, -1e+30
    %v647 = vsel %vm289, %v639, -1e+30
    %v648 = vsel %vm290, %v640, -1e+30
    %v649 = vsel %vm291, %v641, -1e+30
    %v650 = vsel %vm292, %v642, -1e+30
    %v651 = vsel %vm293, %v643, -1e+30
    %v652 = vsel %vm294, %v644, -1e+30
    %v653 = vsel %vm295, %v645, -1e+30
    %v654 = vmax.f32 %v646, %v647
    %655 = vmax.xlane.f32.xlu0 %v654
    %v656 = vpop.xlane.xlu0 %655
    %v657 = vmax.f32 %v648, %v649
    %658 = vmax.xlane.f32.xlu0 %v657
    %v659 = vpop.xlane.xlu0 %658
    %v660 = vmax.f32 %v650, %v651
    %661 = vmax.xlane.f32.xlu0 %v660
    %v662 = vpop.xlane.xlu0 %661
    %v663 = vmax.f32 %v652, %v653
    %664 = vmax.xlane.f32.xlu0 %v663
    %v665 = vpop.xlane.xlu0 %664
    %v666 = vsub.f32 %v646, %v656
    %v667 = vsub.f32 %v647, %v656
    %v668 = vsub.f32 %v648, %v659
    %v669 = vsub.f32 %v649, %v659
    %v670 = vsub.f32 %v650, %v662
    %v671 = vsub.f32 %v651, %v662
    %v672 = vsub.f32 %v652, %v665
    %v673 = vsub.f32 %v653, %v665
    %v674 = vmul.f32 %v666, 1.442695
    %v675 = vpow.pop %v674
    %v676 = vmul.f32 %v667, 1.442695
    %v677 = vpow.pop %v676
    %v678 = vmul.f32 %v668, 1.442695
    %v679 = vpow.pop %v678
    %v680 = vmul.f32 %v669, 1.442695
    %v681 = vpow.pop %v680
    %v682 = vmul.f32 %v670, 1.442695
    %v683 = vpow.pop %v682
    %v684 = vmul.f32 %v671, 1.442695
    %v685 = vpow.pop %v684
    %v686 = vmul.f32 %v672, 1.442695
    %v687 = vpow.pop %v686
    %v688 = vmul.f32 %v673, 1.442695
    %v689 = vpow.pop %v688
    %v690 = vmul.f32 %v675, %v280
    %v691 = vmul.f32 %v677, %v281
    %v692 = vmul.f32 %v679, %v282
    %v693 = vmul.f32 %v681, %v283
    %v694 = vmul.f32 %v683, %v284
    %v695 = vmul.f32 %v685, %v285
    %v696 = vmul.f32 %v687, %v286
    %v697 = vmul.f32 %v689, %v287
    %v698 = vperm.slane %v253, 2
    %v699 = vperm.slane %v273, 2
    %v700 = vmul.f32 %v690, %v698
    %v701 = vmul.f32 %v691, %v699
    %v702 = vmul.f32 %v692, %v698
    %v703 = vmul.f32 %v693, %v699
    %v704 = vmul.f32 %v694, %v698
    %v705 = vmul.f32 %v695, %v699
    %v706 = vmul.f32 %v696, %v698
    %v707 = vmul.f32 %v697, %v699
    %v708 = vadd.f32 %v700, %v701
    %709 = vadd.xlane.f32.xlu0 %v708
    %v710 = vpop.xlane.xlu0 %709
    %v711 = vadd.f32 %v702, %v703
    %712 = vadd.xlane.f32.xlu0 %v711
    %v713 = vpop.xlane.xlu0 %712
    %v714 = vadd.f32 %v704, %v705
    %715 = vadd.xlane.f32.xlu0 %v714
    %v716 = vpop.xlane.xlu0 %715
    %v717 = vadd.f32 %v706, %v707
    %718 = vadd.xlane.f32.xlu0 %v717
    %v719 = vpop.xlane.xlu0 %718
    %v720 = vadd.f32 %v690, %v691
    %721 = vadd.xlane.f32.xlu0 %v720
    %v722 = vpop.xlane.xlu0 %721
    %v723 = vadd.f32 %v692, %v693
    %724 = vadd.xlane.f32.xlu0 %v723
    %v725 = vpop.xlane.xlu0 %724
    %v726 = vadd.f32 %v694, %v695
    %727 = vadd.xlane.f32.xlu0 %v726
    %v728 = vpop.xlane.xlu0 %727
    %v729 = vadd.f32 %v696, %v697
    %730 = vadd.xlane.f32.xlu0 %v729
    %v731 = vpop.xlane.xlu0 %730
    %v732 = vrcp.pop %v722
    %v733 = vrcp.pop %v725
    %v734 = vrcp.pop %v728
    %v735 = vrcp.pop %v731
    %v736 = vmul.f32 %v710, %v732
    %v737 = vmul.f32 %v713, %v733
    %v738 = vmul.f32 %v716, %v734
    %v739 = vmul.f32 %v719, %v735
    %v740 = vadd.f32 %v592, %v736
    %v741 = vadd.f32 %v593, %v737
    %v742 = vadd.f32 %v594, %v738
    %v743 = vadd.f32 %v595, %v739
    %744 = vset.pattern.permute.xlu0 3
    %745 = vperm.xlu0 %744, %v115
    %v746 = vpop.permute.xlu0 %745
    %748 = vset.pattern.permute.xlu0 3
    %749 = vperm.xlu0 %748, %v116
    %v750 = vpop.permute.xlu0 %749
    %752 = vset.pattern.permute.xlu0 3
    %753 = vperm.xlu0 %752, %v117
    %v754 = vpop.permute.xlu0 %753
    %756 = vset.pattern.permute.xlu0 3
    %757 = vperm.xlu0 %756, %v118
    %v758 = vpop.permute.xlu0 %757
    %v760 = vperm.slane %v253, 7
    %v761 = vperm.slane %v273, 7
    %v762 = vadd.f32 %v746, %v760
    %v763 = vadd.f32 %v746, %v761
    %v764 = vadd.f32 %v750, %v760
    %v765 = vadd.f32 %v750, %v761
    %v766 = vadd.f32 %v754, %v760
    %v767 = vadd.f32 %v754, %v761
    %v768 = vadd.f32 %v758, %v760
    %v769 = vadd.f32 %v758, %v761
    %vm770 = vcmp.ge.f32.partialorder %v762, 0.0
    %vm771 = vcmp.ge.f32.partialorder %v763, 0.0
    %vm772 = vcmp.ge.f32.partialorder %v764, 0.0
    %vm773 = vcmp.ge.f32.partialorder %v765, 0.0
    %vm774 = vcmp.ge.f32.partialorder %v766, 0.0
    %vm775 = vcmp.ge.f32.partialorder %v767, 0.0
    %vm776 = vcmp.ge.f32.partialorder %v768, 0.0
    %vm777 = vcmp.ge.f32.partialorder %v769, 0.0
    %v778 = vmul.f32 %v762, 0.2
    %v779 = vmul.f32 %v763, 0.2
    %v780 = vmul.f32 %v764, 0.2
    %v781 = vmul.f32 %v765, 0.2
    %v782 = vmul.f32 %v766, 0.2
    %v783 = vmul.f32 %v767, 0.2
    %v784 = vmul.f32 %v768, 0.2
    %v785 = vmul.f32 %v769, 0.2
    %v786 = vsel %vm770, %v762, %v778
    %v787 = vsel %vm771, %v763, %v779
    %v788 = vsel %vm772, %v764, %v780
    %v789 = vsel %vm773, %v765, %v781
    %v790 = vsel %vm774, %v766, %v782
    %v791 = vsel %vm775, %v767, %v783
    %v792 = vsel %vm776, %v768, %v784
    %v793 = vsel %vm777, %v769, %v785
    %v794 = vsel %vm288, %v786, -1e+30
    %v795 = vsel %vm289, %v787, -1e+30
    %v796 = vsel %vm290, %v788, -1e+30
    %v797 = vsel %vm291, %v789, -1e+30
    %v798 = vsel %vm292, %v790, -1e+30
    %v799 = vsel %vm293, %v791, -1e+30
    %v800 = vsel %vm294, %v792, -1e+30
    %v801 = vsel %vm295, %v793, -1e+30
    %v802 = vmax.f32 %v794, %v795
    %803 = vmax.xlane.f32.xlu0 %v802
    %v804 = vpop.xlane.xlu0 %803
    %v805 = vmax.f32 %v796, %v797
    %806 = vmax.xlane.f32.xlu0 %v805
    %v807 = vpop.xlane.xlu0 %806
    %v808 = vmax.f32 %v798, %v799
    %809 = vmax.xlane.f32.xlu0 %v808
    %v810 = vpop.xlane.xlu0 %809
    %v811 = vmax.f32 %v800, %v801
    %812 = vmax.xlane.f32.xlu0 %v811
    %v813 = vpop.xlane.xlu0 %812
    %v814 = vsub.f32 %v794, %v804
    %v815 = vsub.f32 %v795, %v804
    %v816 = vsub.f32 %v796, %v807
    %v817 = vsub.f32 %v797, %v807
    %v818 = vsub.f32 %v798, %v810
    %v819 = vsub.f32 %v799, %v810
    %v820 = vsub.f32 %v800, %v813
    %v821 = vsub.f32 %v801, %v813
    %v822 = vmul.f32 %v814, 1.442695
    %v823 = vpow.pop %v822
    %v824 = vmul.f32 %v815, 1.442695
    %v825 = vpow.pop %v824
    %v826 = vmul.f32 %v816, 1.442695
    %v827 = vpow.pop %v826
    %v828 = vmul.f32 %v817, 1.442695
    %v829 = vpow.pop %v828
    %v830 = vmul.f32 %v818, 1.442695
    %v831 = vpow.pop %v830
    %v832 = vmul.f32 %v819, 1.442695
    %v833 = vpow.pop %v832
    %v834 = vmul.f32 %v820, 1.442695
    %v835 = vpow.pop %v834
    %v836 = vmul.f32 %v821, 1.442695
    %v837 = vpow.pop %v836
    %v838 = vmul.f32 %v823, %v280
    %v839 = vmul.f32 %v825, %v281
    %v840 = vmul.f32 %v827, %v282
    %v841 = vmul.f32 %v829, %v283
    %v842 = vmul.f32 %v831, %v284
    %v843 = vmul.f32 %v833, %v285
    %v844 = vmul.f32 %v835, %v286
    %v845 = vmul.f32 %v837, %v287
    %v846 = vperm.slane %v253, 3
    %v847 = vperm.slane %v273, 3
    %v848 = vmul.f32 %v838, %v846
    %v849 = vmul.f32 %v839, %v847
    %v850 = vmul.f32 %v840, %v846
    %v851 = vmul.f32 %v841, %v847
    %v852 = vmul.f32 %v842, %v846
    %v853 = vmul.f32 %v843, %v847
    %v854 = vmul.f32 %v844, %v846
    %v855 = vmul.f32 %v845, %v847
    %v856 = vadd.f32 %v848, %v849
    %857 = vadd.xlane.f32.xlu0 %v856
    %v858 = vpop.xlane.xlu0 %857
    %v859 = vadd.f32 %v850, %v851
    %860 = vadd.xlane.f32.xlu0 %v859
    %v861 = vpop.xlane.xlu0 %860
    %v862 = vadd.f32 %v852, %v853
    %863 = vadd.xlane.f32.xlu0 %v862
    %v864 = vpop.xlane.xlu0 %863
    %v865 = vadd.f32 %v854, %v855
    %866 = vadd.xlane.f32.xlu0 %v865
    %v867 = vpop.xlane.xlu0 %866
    %v868 = vadd.f32 %v838, %v839
    %869 = vadd.xlane.f32.xlu0 %v868
    %v870 = vpop.xlane.xlu0 %869
    %v871 = vadd.f32 %v840, %v841
    %872 = vadd.xlane.f32.xlu0 %v871
    %v873 = vpop.xlane.xlu0 %872
    %v874 = vadd.f32 %v842, %v843
    %875 = vadd.xlane.f32.xlu0 %v874
    %v876 = vpop.xlane.xlu0 %875
    %v877 = vadd.f32 %v844, %v845
    %878 = vadd.xlane.f32.xlu0 %v877
    %v879 = vpop.xlane.xlu0 %878
    %v880 = vrcp.pop %v870
    %v881 = vrcp.pop %v873
    %v882 = vrcp.pop %v876
    %v883 = vrcp.pop %v879
    %v884 = vmul.f32 %v858, %v880
    %v885 = vmul.f32 %v861, %v881
    %v886 = vmul.f32 %v864, %v882
    %v887 = vmul.f32 %v867, %v883
    %v888 = vadd.f32 %v740, %v884
    %v889 = vadd.f32 %v741, %v885
    %v890 = vadd.f32 %v742, %v886
    %v891 = vadd.f32 %v743, %v887
    %v892 = vld [vmem:[#allocation7] sm:$0x3]
    %v893 = vld [vmem:[#allocation8] sm:$0x3]
    %v894 = vld [vmem:[%s5] sm:$0xff]
    %v895 = vld [vmem:[%s5 + $0x8] sm:$0xff]
    %v896 = vld [vmem:[%s5 + $0x10] sm:$0xff]
    %v897 = vld [vmem:[%s5 + $0x18] sm:$0xff]
    %v898 = vld [vmem:[#allocation10] sm:$0xff]
    %v899 = vperm.slane %v892, 0
    %v900 = vperm.slane %v892, 1
    %vm901 = vcmp.eq.s32.totalorder %v121, %v899
    %vm902 = vcmp.eq.s32.totalorder %v121, %v900
    %vm903 = vcmp.eq.s32.totalorder %v122, %v899
    %vm904 = vcmp.eq.s32.totalorder %v122, %v900
    %vm905 = vcmp.eq.s32.totalorder %v123, %v899
    %vm906 = vcmp.eq.s32.totalorder %v123, %v900
    %vm907 = vcmp.eq.s32.totalorder %v124, %v899
    %vm908 = vcmp.eq.s32.totalorder %v124, %v900
    %vm909 = vcmp.eq.s32.totalorder %v125, %v899
    %vm910 = vcmp.eq.s32.totalorder %v125, %v900
    %vm911 = vcmp.eq.s32.totalorder %v126, %v899
    %vm912 = vcmp.eq.s32.totalorder %v126, %v900
    %vm913 = vcmp.eq.s32.totalorder %v127, %v899
    %vm914 = vcmp.eq.s32.totalorder %v127, %v900
    %vm915 = vcmp.eq.s32.totalorder %v128, %v899
    %vm916 = vcmp.eq.s32.totalorder %v128, %v900
    %vm917 = vcmp.eq.s32.totalorder %v129, %v899
    %vm918 = vcmp.eq.s32.totalorder %v129, %v900
    %vm919 = vcmp.eq.s32.totalorder %v130, %v899
    %vm920 = vcmp.eq.s32.totalorder %v130, %v900
    %vm921 = vcmp.eq.s32.totalorder %v131, %v899
    %vm922 = vcmp.eq.s32.totalorder %v131, %v900
    %vm923 = vcmp.eq.s32.totalorder %v132, %v899
    %vm924 = vcmp.eq.s32.totalorder %v132, %v900
    %vm925 = vcmp.eq.s32.totalorder %v133, %v899
    %vm926 = vcmp.eq.s32.totalorder %v133, %v900
    %vm927 = vcmp.eq.s32.totalorder %v134, %v899
    %vm928 = vcmp.eq.s32.totalorder %v134, %v900
    %vm929 = vcmp.eq.s32.totalorder %v135, %v899
    %vm930 = vcmp.eq.s32.totalorder %v135, %v900
    %vm931 = vcmp.eq.s32.totalorder %v136, %v899
    %vm932 = vcmp.eq.s32.totalorder %v136, %v900
    %v933 = vsel %vm901, 1, 0
    %v934 = vsel %vm902, 1, 0
    %v935 = vsel %vm903, 1, 0
    %v936 = vsel %vm904, 1, 0
    %v937 = vsel %vm905, 1, 0
    %v938 = vsel %vm906, 1, 0
    %v939 = vsel %vm907, 1, 0
    %v940 = vsel %vm908, 1, 0
    %v941 = vsel %vm909, 1, 0
    %v942 = vsel %vm910, 1, 0
    %v943 = vsel %vm911, 1, 0
    %v944 = vsel %vm912, 1, 0
    %v945 = vsel %vm913, 1, 0
    %v946 = vsel %vm914, 1, 0
    %v947 = vsel %vm915, 1, 0
    %v948 = vsel %vm916, 1, 0
    %v949 = vsel %vm917, 1, 0
    %v950 = vsel %vm918, 1, 0
    %v951 = vsel %vm919, 1, 0
    %v952 = vsel %vm920, 1, 0
    %v953 = vsel %vm921, 1, 0
    %v954 = vsel %vm922, 1, 0
    %v955 = vsel %vm923, 1, 0
    %v956 = vsel %vm924, 1, 0
    %v957 = vsel %vm925, 1, 0
    %v958 = vsel %vm926, 1, 0
    %v959 = vsel %vm927, 1, 0
    %v960 = vsel %vm928, 1, 0
    %v961 = vsel %vm929, 1, 0
    %v962 = vsel %vm930, 1, 0
    %v963 = vsel %vm931, 1, 0
    %v964 = vsel %vm932, 1, 0
    %v965 = vcvt.s32.f32 %v933
    %v966 = vcvt.s32.f32 %v934
    %v967 = vcvt.s32.f32 %v935
    %v968 = vcvt.s32.f32 %v936
    %v969 = vcvt.s32.f32 %v937
    %v970 = vcvt.s32.f32 %v938
    %v971 = vcvt.s32.f32 %v939
    %v972 = vcvt.s32.f32 %v940
    %v973 = vcvt.s32.f32 %v941
    %v974 = vcvt.s32.f32 %v942
    %v975 = vcvt.s32.f32 %v943
    %v976 = vcvt.s32.f32 %v944
    %v977 = vcvt.s32.f32 %v945
    %v978 = vcvt.s32.f32 %v946
    %v979 = vcvt.s32.f32 %v947
    %v980 = vcvt.s32.f32 %v948
    %v981 = vcvt.s32.f32 %v949
    %v982 = vcvt.s32.f32 %v950
    %v983 = vcvt.s32.f32 %v951
    %v984 = vcvt.s32.f32 %v952
    %v985 = vcvt.s32.f32 %v953
    %v986 = vcvt.s32.f32 %v954
    %v987 = vcvt.s32.f32 %v955
    %v988 = vcvt.s32.f32 %v956
    %v989 = vcvt.s32.f32 %v957
    %v990 = vcvt.s32.f32 %v958
    %v991 = vcvt.s32.f32 %v959
    %v992 = vcvt.s32.f32 %v960
    %v993 = vcvt.s32.f32 %v961
    %v994 = vcvt.s32.f32 %v962
    %v995 = vcvt.s32.f32 %v963
    %v996 = vcvt.s32.f32 %v964
    %997 = vmatpush.msra.mxu0 %v995
    %998 = vmatpush.msra.mxu0 %v993
    %999 = vmatpush.msra.mxu0 %v991
    %1000 = vmatpush.msra.mxu0 %v989
    %1001 = vmatpush.msra.mxu0 %v987
    %1002 = vmatpush.msra.mxu0 %v985
    %1003 = vmatpush.msra.mxu0 %v983
    %1004 = vmatpush.msra.mxu0 %v981
    %1005 = vmatpush.msra.mxu0 %v979
    %1006 = vmatpush.msra.mxu0 %v977
    %1007 = vmatpush.msra.mxu0 %v975
    %1008 = vmatpush.msra.mxu0 %v973
    %1009 = vmatpush.msra.mxu0 %v971
    %1010 = vmatpush.msra.mxu0 %v969
    %1011 = vmatpush.msra.mxu0 %v967
    %1012 = vmatpush.msra.mxu0 %v965
    %1013 = vmatmul.f32.gmra.mxu0 %v898
    %v1014 = vpop.f32.mrf.mxu0
    %v1015 = vadd.f32 0.0, %v1014
    %1016 = vdwg.mxu0
    %1017 = vmatpush.msra.mxu0 %v996
    %1018 = vmatpush.msra.mxu0 %v994
    %1019 = vmatpush.msra.mxu0 %v992
    %1020 = vmatpush.msra.mxu0 %v990
    %1021 = vmatpush.msra.mxu0 %v988
    %1022 = vmatpush.msra.mxu0 %v986
    %1023 = vmatpush.msra.mxu0 %v984
    %1024 = vmatpush.msra.mxu0 %v982
    %1025 = vmatpush.msra.mxu0 %v980
    %1026 = vmatpush.msra.mxu0 %v978
    %1027 = vmatpush.msra.mxu0 %v976
    %1028 = vmatpush.msra.mxu0 %v974
    %1029 = vmatpush.msra.mxu0 %v972
    %1030 = vmatpush.msra.mxu0 %v970
    %1031 = vmatpush.msra.mxu0 %v968
    %1032 = vmatpush.msra.mxu0 %v966
    %1033 = vmatmul.f32.gmra.mxu0 %v898
    %v1034 = vpop.f32.mrf.mxu0
    %v1035 = vadd.f32 0.0, %v1034
    %1036 = vdwg.mxu0
    %v1038 = vperm.slane %v893, 0
    %v1039 = vperm.slane %v893, 1
    %v1042 = vmul.f32 %v1038, %v105
    %v1043 = vmul.f32 %v1039, %v106
    %v1044 = vmul.f32 %v1038, %v107
    %v1045 = vmul.f32 %v1039, %v108
    %v1046 = vmul.f32 %v1038, %v109
    %v1047 = vmul.f32 %v1039, %v110
    %v1048 = vmul.f32 %v1038, %v111
    %v1049 = vmul.f32 %v1039, %v112
    %vm1050 = vcmp.gt.f32.partialorder %v1042, 0.0
    %vm1051 = vcmp.gt.f32.partialorder %v1043, 0.0
    %vm1052 = vcmp.gt.f32.partialorder %v1044, 0.0
    %vm1053 = vcmp.gt.f32.partialorder %v1045, 0.0
    %vm1054 = vcmp.gt.f32.partialorder %v1046, 0.0
    %vm1055 = vcmp.gt.f32.partialorder %v1047, 0.0
    %vm1056 = vcmp.gt.f32.partialorder %v1048, 0.0
    %vm1057 = vcmp.gt.f32.partialorder %v1049, 0.0
    %1059 = vset.pattern.permute.xlu0 0
    %1060 = vperm.xlu0 %1059, %v894
    %v1061 = vpop.permute.xlu0 %1060
    %1064 = vset.pattern.permute.xlu0 0
    %1065 = vperm.xlu0 %1064, %v895
    %v1066 = vpop.permute.xlu0 %1065
    %1069 = vset.pattern.permute.xlu0 0
    %1070 = vperm.xlu0 %1069, %v896
    %v1071 = vpop.permute.xlu0 %1070
    %1074 = vset.pattern.permute.xlu0 0
    %1075 = vperm.xlu0 %1074, %v897
    %v1076 = vpop.permute.xlu0 %1075
    %v1078 = vperm.slane %v1015, 4
    %v1079 = vperm.slane %v1035, 4
    %v1080 = vadd.f32 %v1061, %v1078
    %v1081 = vadd.f32 %v1061, %v1079
    %v1082 = vadd.f32 %v1066, %v1078
    %v1083 = vadd.f32 %v1066, %v1079
    %v1084 = vadd.f32 %v1071, %v1078
    %v1085 = vadd.f32 %v1071, %v1079
    %v1086 = vadd.f32 %v1076, %v1078
    %v1087 = vadd.f32 %v1076, %v1079
    %vm1088 = vcmp.ge.f32.partialorder %v1080, 0.0
    %vm1089 = vcmp.ge.f32.partialorder %v1081, 0.0
    %vm1090 = vcmp.ge.f32.partialorder %v1082, 0.0
    %vm1091 = vcmp.ge.f32.partialorder %v1083, 0.0
    %vm1092 = vcmp.ge.f32.partialorder %v1084, 0.0
    %vm1093 = vcmp.ge.f32.partialorder %v1085, 0.0
    %vm1094 = vcmp.ge.f32.partialorder %v1086, 0.0
    %vm1095 = vcmp.ge.f32.partialorder %v1087, 0.0
    %v1096 = vmul.f32 %v1080, 0.2
    %v1097 = vmul.f32 %v1081, 0.2
    %v1098 = vmul.f32 %v1082, 0.2
    %v1099 = vmul.f32 %v1083, 0.2
    %v1100 = vmul.f32 %v1084, 0.2
    %v1101 = vmul.f32 %v1085, 0.2
    %v1102 = vmul.f32 %v1086, 0.2
    %v1103 = vmul.f32 %v1087, 0.2
    %v1104 = vsel %vm1088, %v1080, %v1096
    %v1105 = vsel %vm1089, %v1081, %v1097
    %v1106 = vsel %vm1090, %v1082, %v1098
    %v1107 = vsel %vm1091, %v1083, %v1099
    %v1108 = vsel %vm1092, %v1084, %v1100
    %v1109 = vsel %vm1093, %v1085, %v1101
    %v1110 = vsel %vm1094, %v1086, %v1102
    %v1111 = vsel %vm1095, %v1087, %v1103
    %v1112 = vsel %vm1050, %v1104, -1e+30
    %v1113 = vsel %vm1051, %v1105, -1e+30
    %v1114 = vsel %vm1052, %v1106, -1e+30
    %v1115 = vsel %vm1053, %v1107, -1e+30
    %v1116 = vsel %vm1054, %v1108, -1e+30
    %v1117 = vsel %vm1055, %v1109, -1e+30
    %v1118 = vsel %vm1056, %v1110, -1e+30
    %v1119 = vsel %vm1057, %v1111, -1e+30
    %v1120 = vmax.f32 %v1112, %v1113
    %1121 = vmax.xlane.f32.xlu0 %v1120
    %v1122 = vpop.xlane.xlu0 %1121
    %v1123 = vmax.f32 %v1114, %v1115
    %1124 = vmax.xlane.f32.xlu0 %v1123
    %v1125 = vpop.xlane.xlu0 %1124
    %v1126 = vmax.f32 %v1116, %v1117
    %1127 = vmax.xlane.f32.xlu0 %v1126
    %v1128 = vpop.xlane.xlu0 %1127
    %v1129 = vmax.f32 %v1118, %v1119
    %1130 = vmax.xlane.f32.xlu0 %v1129
    %v1131 = vpop.xlane.xlu0 %1130
    %v1132 = vsub.f32 %v1112, %v1122
    %v1133 = vsub.f32 %v1113, %v1122
    %v1134 = vsub.f32 %v1114, %v1125
    %v1135 = vsub.f32 %v1115, %v1125
    %v1136 = vsub.f32 %v1116, %v1128
    %v1137 = vsub.f32 %v1117, %v1128
    %v1138 = vsub.f32 %v1118, %v1131
    %v1139 = vsub.f32 %v1119, %v1131
    %v1140 = vmul.f32 %v1132, 1.442695
    %v1141 = vpow.pop %v1140
    %v1142 = vmul.f32 %v1133, 1.442695
    %v1143 = vpow.pop %v1142
    %v1144 = vmul.f32 %v1134, 1.442695
    %v1145 = vpow.pop %v1144
    %v1146 = vmul.f32 %v1135, 1.442695
    %v1147 = vpow.pop %v1146
    %v1148 = vmul.f32 %v1136, 1.442695
    %v1149 = vpow.pop %v1148
    %v1150 = vmul.f32 %v1137, 1.442695
    %v1151 = vpow.pop %v1150
    %v1152 = vmul.f32 %v1138, 1.442695
    %v1153 = vpow.pop %v1152
    %v1154 = vmul.f32 %v1139, 1.442695
    %v1155 = vpow.pop %v1154
    %v1156 = vmul.f32 %v1141, %v1042
    %v1157 = vmul.f32 %v1143, %v1043
    %v1158 = vmul.f32 %v1145, %v1044
    %v1159 = vmul.f32 %v1147, %v1045
    %v1160 = vmul.f32 %v1149, %v1046
    %v1161 = vmul.f32 %v1151, %v1047
    %v1162 = vmul.f32 %v1153, %v1048
    %v1163 = vmul.f32 %v1155, %v1049
    %v1164 = vperm.slane %v1015, 0
    %v1165 = vperm.slane %v1035, 0
    %v1166 = vmul.f32 %v1156, %v1164
    %v1167 = vmul.f32 %v1157, %v1165
    %v1168 = vmul.f32 %v1158, %v1164
    %v1169 = vmul.f32 %v1159, %v1165
    %v1170 = vmul.f32 %v1160, %v1164
    %v1171 = vmul.f32 %v1161, %v1165
    %v1172 = vmul.f32 %v1162, %v1164
    %v1173 = vmul.f32 %v1163, %v1165
    %v1174 = vadd.f32 %v1166, %v1167
    %1175 = vadd.xlane.f32.xlu0 %v1174
    %v1176 = vpop.xlane.xlu0 %1175
    %v1177 = vadd.f32 %v1168, %v1169
    %1178 = vadd.xlane.f32.xlu0 %v1177
    %v1179 = vpop.xlane.xlu0 %1178
    %v1180 = vadd.f32 %v1170, %v1171
    %1181 = vadd.xlane.f32.xlu0 %v1180
    %v1182 = vpop.xlane.xlu0 %1181
    %v1183 = vadd.f32 %v1172, %v1173
    %1184 = vadd.xlane.f32.xlu0 %v1183
    %v1185 = vpop.xlane.xlu0 %1184
    %v1186 = vadd.f32 %v1156, %v1157
    %1187 = vadd.xlane.f32.xlu0 %v1186
    %v1188 = vpop.xlane.xlu0 %1187
    %v1189 = vadd.f32 %v1158, %v1159
    %1190 = vadd.xlane.f32.xlu0 %v1189
    %v1191 = vpop.xlane.xlu0 %1190
    %v1192 = vadd.f32 %v1160, %v1161
    %1193 = vadd.xlane.f32.xlu0 %v1192
    %v1194 = vpop.xlane.xlu0 %1193
    %v1195 = vadd.f32 %v1162, %v1163
    %1196 = vadd.xlane.f32.xlu0 %v1195
    %v1197 = vpop.xlane.xlu0 %1196
    %v1198 = vrcp.pop %v1188
    %v1199 = vrcp.pop %v1191
    %v1200 = vrcp.pop %v1194
    %v1201 = vrcp.pop %v1197
    %v1202 = vmul.f32 %v1176, %v1198
    %v1203 = vmul.f32 %v1179, %v1199
    %v1204 = vmul.f32 %v1182, %v1200
    %v1205 = vmul.f32 %v1185, %v1201
    %v1206 = vadd.f32 %v1202, 0.0
    %v1207 = vadd.f32 %v1203, 0.0
    %v1208 = vadd.f32 %v1204, 0.0
    %v1209 = vadd.f32 %v1205, 0.0
    %1210 = vset.pattern.permute.xlu0 1
    %1211 = vperm.xlu0 %1210, %v894
    %v1212 = vpop.permute.xlu0 %1211
    %1214 = vset.pattern.permute.xlu0 1
    %1215 = vperm.xlu0 %1214, %v895
    %v1216 = vpop.permute.xlu0 %1215
    %1218 = vset.pattern.permute.xlu0 1
    %1219 = vperm.xlu0 %1218, %v896
    %v1220 = vpop.permute.xlu0 %1219
    %1222 = vset.pattern.permute.xlu0 1
    %1223 = vperm.xlu0 %1222, %v897
    %v1224 = vpop.permute.xlu0 %1223
    %v1226 = vperm.slane %v1015, 5
    %v1227 = vperm.slane %v1035, 5
    %v1228 = vadd.f32 %v1212, %v1226
    %v1229 = vadd.f32 %v1212, %v1227
    %v1230 = vadd.f32 %v1216, %v1226
    %v1231 = vadd.f32 %v1216, %v1227
    %v1232 = vadd.f32 %v1220, %v1226
    %v1233 = vadd.f32 %v1220, %v1227
    %v1234 = vadd.f32 %v1224, %v1226
    %v1235 = vadd.f32 %v1224, %v1227
    %vm1236 = vcmp.ge.f32.partialorder %v1228, 0.0
    %vm1237 = vcmp.ge.f32.partialorder %v1229, 0.0
    %vm1238 = vcmp.ge.f32.partialorder %v1230, 0.0
    %vm1239 = vcmp.ge.f32.partialorder %v1231, 0.0
    %vm1240 = vcmp.ge.f32.partialorder %v1232, 0.0
    %vm1241 = vcmp.ge.f32.partialorder %v1233, 0.0
    %vm1242 = vcmp.ge.f32.partialorder %v1234, 0.0
    %vm1243 = vcmp.ge.f32.partialorder %v1235, 0.0
    %v1244 = vmul.f32 %v1228, 0.2
    %v1245 = vmul.f32 %v1229, 0.2
    %v1246 = vmul.f32 %v1230, 0.2
    %v1247 = vmul.f32 %v1231, 0.2
    %v1248 = vmul.f32 %v1232, 0.2
    %v1249 = vmul.f32 %v1233, 0.2
    %v1250 = vmul.f32 %v1234, 0.2
    %v1251 = vmul.f32 %v1235, 0.2
    %v1252 = vsel %vm1236, %v1228, %v1244
    %v1253 = vsel %vm1237, %v1229, %v1245
    %v1254 = vsel %vm1238, %v1230, %v1246
    %v1255 = vsel %vm1239, %v1231, %v1247
    %v1256 = vsel %vm1240, %v1232, %v1248
    %v1257 = vsel %vm1241, %v1233, %v1249
    %v1258 = vsel %vm1242, %v1234, %v1250
    %v1259 = vsel %vm1243, %v1235, %v1251
    %v1260 = vsel %vm1050, %v1252, -1e+30
    %v1261 = vsel %vm1051, %v1253, -1e+30
    %v1262 = vsel %vm1052, %v1254, -1e+30
    %v1263 = vsel %vm1053, %v1255, -1e+30
    %v1264 = vsel %vm1054, %v1256, -1e+30
    %v1265 = vsel %vm1055, %v1257, -1e+30
    %v1266 = vsel %vm1056, %v1258, -1e+30
    %v1267 = vsel %vm1057, %v1259, -1e+30
    %v1268 = vmax.f32 %v1260, %v1261
    %1269 = vmax.xlane.f32.xlu0 %v1268
    %v1270 = vpop.xlane.xlu0 %1269
    %v1271 = vmax.f32 %v1262, %v1263
    %1272 = vmax.xlane.f32.xlu0 %v1271
    %v1273 = vpop.xlane.xlu0 %1272
    %v1274 = vmax.f32 %v1264, %v1265
    %1275 = vmax.xlane.f32.xlu0 %v1274
    %v1276 = vpop.xlane.xlu0 %1275
    %v1277 = vmax.f32 %v1266, %v1267
    %1278 = vmax.xlane.f32.xlu0 %v1277
    %v1279 = vpop.xlane.xlu0 %1278
    %v1280 = vsub.f32 %v1260, %v1270
    %v1281 = vsub.f32 %v1261, %v1270
    %v1282 = vsub.f32 %v1262, %v1273
    %v1283 = vsub.f32 %v1263, %v1273
    %v1284 = vsub.f32 %v1264, %v1276
    %v1285 = vsub.f32 %v1265, %v1276
    %v1286 = vsub.f32 %v1266, %v1279
    %v1287 = vsub.f32 %v1267, %v1279
    %v1288 = vmul.f32 %v1280, 1.442695
    %v1289 = vpow.pop %v1288
    %v1290 = vmul.f32 %v1281, 1.442695
    %v1291 = vpow.pop %v1290
    %v1292 = vmul.f32 %v1282, 1.442695
    %v1293 = vpow.pop %v1292
    %v1294 = vmul.f32 %v1283, 1.442695
    %v1295 = vpow.pop %v1294
    %v1296 = vmul.f32 %v1284, 1.442695
    %v1297 = vpow.pop %v1296
    %v1298 = vmul.f32 %v1285, 1.442695
    %v1299 = vpow.pop %v1298
    %v1300 = vmul.f32 %v1286, 1.442695
    %v1301 = vpow.pop %v1300
    %v1302 = vmul.f32 %v1287, 1.442695
    %v1303 = vpow.pop %v1302
    %v1304 = vmul.f32 %v1289, %v1042
    %v1305 = vmul.f32 %v1291, %v1043
    %v1306 = vmul.f32 %v1293, %v1044
    %v1307 = vmul.f32 %v1295, %v1045
    %v1308 = vmul.f32 %v1297, %v1046
    %v1309 = vmul.f32 %v1299, %v1047
    %v1310 = vmul.f32 %v1301, %v1048
    %v1311 = vmul.f32 %v1303, %v1049
    %v1312 = vperm.slane %v1015, 1
    %v1313 = vperm.slane %v1035, 1
    %v1314 = vmul.f32 %v1304, %v1312
    %v1315 = vmul.f32 %v1305, %v1313
    %v1316 = vmul.f32 %v1306, %v1312
    %v1317 = vmul.f32 %v1307, %v1313
    %v1318 = vmul.f32 %v1308, %v1312
    %v1319 = vmul.f32 %v1309, %v1313
    %v1320 = vmul.f32 %v1310, %v1312
    %v1321 = vmul.f32 %v1311, %v1313
    %v1322 = vadd.f32 %v1314, %v1315
    %1323 = vadd.xlane.f32.xlu0 %v1322
    %v1324 = vpop.xlane.xlu0 %1323
    %v1325 = vadd.f32 %v1316, %v1317
    %1326 = vadd.xlane.f32.xlu0 %v1325
    %v1327 = vpop.xlane.xlu0 %1326
    %v1328 = vadd.f32 %v1318, %v1319
    %1329 = vadd.xlane.f32.xlu0 %v1328
    %v1330 = vpop.xlane.xlu0 %1329
    %v1331 = vadd.f32 %v1320, %v1321
    %1332 = vadd.xlane.f32.xlu0 %v1331
    %v1333 = vpop.xlane.xlu0 %1332
    %v1334 = vadd.f32 %v1304, %v1305
    %1335 = vadd.xlane.f32.xlu0 %v1334
    %v1336 = vpop.xlane.xlu0 %1335
    %v1337 = vadd.f32 %v1306, %v1307
    %1338 = vadd.xlane.f32.xlu0 %v1337
    %v1339 = vpop.xlane.xlu0 %1338
    %v1340 = vadd.f32 %v1308, %v1309
    %1341 = vadd.xlane.f32.xlu0 %v1340
    %v1342 = vpop.xlane.xlu0 %1341
    %v1343 = vadd.f32 %v1310, %v1311
    %1344 = vadd.xlane.f32.xlu0 %v1343
    %v1345 = vpop.xlane.xlu0 %1344
    %v1346 = vrcp.pop %v1336
    %v1347 = vrcp.pop %v1339
    %v1348 = vrcp.pop %v1342
    %v1349 = vrcp.pop %v1345
    %v1350 = vmul.f32 %v1324, %v1346
    %v1351 = vmul.f32 %v1327, %v1347
    %v1352 = vmul.f32 %v1330, %v1348
    %v1353 = vmul.f32 %v1333, %v1349
    %v1354 = vadd.f32 %v1206, %v1350
    %v1355 = vadd.f32 %v1207, %v1351
    %v1356 = vadd.f32 %v1208, %v1352
    %v1357 = vadd.f32 %v1209, %v1353
    %1358 = vset.pattern.permute.xlu0 2
    %1359 = vperm.xlu0 %1358, %v894
    %v1360 = vpop.permute.xlu0 %1359
    %1362 = vset.pattern.permute.xlu0 2
    %1363 = vperm.xlu0 %1362, %v895
    %v1364 = vpop.permute.xlu0 %1363
    %1366 = vset.pattern.permute.xlu0 2
    %1367 = vperm.xlu0 %1366, %v896
    %v1368 = vpop.permute.xlu0 %1367
    %1370 = vset.pattern.permute.xlu0 2
    %1371 = vperm.xlu0 %1370, %v897
    %v1372 = vpop.permute.xlu0 %1371
    %v1374 = vperm.slane %v1015, 6
    %v1375 = vperm.slane %v1035, 6
    %v1376 = vadd.f32 %v1360, %v1374
    %v1377 = vadd.f32 %v1360, %v1375
    %v1378 = vadd.f32 %v1364, %v1374
    %v1379 = vadd.f32 %v1364, %v1375
    %v1380 = vadd.f32 %v1368, %v1374
    %v1381 = vadd.f32 %v1368, %v1375
    %v1382 = vadd.f32 %v1372, %v1374
    %v1383 = vadd.f32 %v1372, %v1375
    %vm1384 = vcmp.ge.f32.partialorder %v1376, 0.0
    %vm1385 = vcmp.ge.f32.partialorder %v1377, 0.0
    %vm1386 = vcmp.ge.f32.partialorder %v1378, 0.0
    %vm1387 = vcmp.ge.f32.partialorder %v1379, 0.0
    %vm1388 = vcmp.ge.f32.partialorder %v1380, 0.0
    %vm1389 = vcmp.ge.f32.partialorder %v1381, 0.0
    %vm1390 = vcmp.ge.f32.partialorder %v1382, 0.0
    %vm1391 = vcmp.ge.f32.partialorder %v1383, 0.0
    %v1392 = vmul.f32 %v1376, 0.2
    %v1393 = vmul.f32 %v1377, 0.2
    %v1394 = vmul.f32 %v1378, 0.2
    %v1395 = vmul.f32 %v1379, 0.2
    %v1396 = vmul.f32 %v1380, 0.2
    %v1397 = vmul.f32 %v1381, 0.2
    %v1398 = vmul.f32 %v1382, 0.2
    %v1399 = vmul.f32 %v1383, 0.2
    %v1400 = vsel %vm1384, %v1376, %v1392
    %v1401 = vsel %vm1385, %v1377, %v1393
    %v1402 = vsel %vm1386, %v1378, %v1394
    %v1403 = vsel %vm1387, %v1379, %v1395
    %v1404 = vsel %vm1388, %v1380, %v1396
    %v1405 = vsel %vm1389, %v1381, %v1397
    %v1406 = vsel %vm1390, %v1382, %v1398
    %v1407 = vsel %vm1391, %v1383, %v1399
    %v1408 = vsel %vm1050, %v1400, -1e+30
    %v1409 = vsel %vm1051, %v1401, -1e+30
    %v1410 = vsel %vm1052, %v1402, -1e+30
    %v1411 = vsel %vm1053, %v1403, -1e+30
    %v1412 = vsel %vm1054, %v1404, -1e+30
    %v1413 = vsel %vm1055, %v1405, -1e+30
    %v1414 = vsel %vm1056, %v1406, -1e+30
    %v1415 = vsel %vm1057, %v1407, -1e+30
    %v1416 = vmax.f32 %v1408, %v1409
    %1417 = vmax.xlane.f32.xlu0 %v1416
    %v1418 = vpop.xlane.xlu0 %1417
    %v1419 = vmax.f32 %v1410, %v1411
    %1420 = vmax.xlane.f32.xlu0 %v1419
    %v1421 = vpop.xlane.xlu0 %1420
    %v1422 = vmax.f32 %v1412, %v1413
    %1423 = vmax.xlane.f32.xlu0 %v1422
    %v1424 = vpop.xlane.xlu0 %1423
    %v1425 = vmax.f32 %v1414, %v1415
    %1426 = vmax.xlane.f32.xlu0 %v1425
    %v1427 = vpop.xlane.xlu0 %1426
    %v1428 = vsub.f32 %v1408, %v1418
    %v1429 = vsub.f32 %v1409, %v1418
    %v1430 = vsub.f32 %v1410, %v1421
    %v1431 = vsub.f32 %v1411, %v1421
    %v1432 = vsub.f32 %v1412, %v1424
    %v1433 = vsub.f32 %v1413, %v1424
    %v1434 = vsub.f32 %v1414, %v1427
    %v1435 = vsub.f32 %v1415, %v1427
    %v1436 = vmul.f32 %v1428, 1.442695
    %v1437 = vpow.pop %v1436
    %v1438 = vmul.f32 %v1429, 1.442695
    %v1439 = vpow.pop %v1438
    %v1440 = vmul.f32 %v1430, 1.442695
    %v1441 = vpow.pop %v1440
    %v1442 = vmul.f32 %v1431, 1.442695
    %v1443 = vpow.pop %v1442
    %v1444 = vmul.f32 %v1432, 1.442695
    %v1445 = vpow.pop %v1444
    %v1446 = vmul.f32 %v1433, 1.442695
    %v1447 = vpow.pop %v1446
    %v1448 = vmul.f32 %v1434, 1.442695
    %v1449 = vpow.pop %v1448
    %v1450 = vmul.f32 %v1435, 1.442695
    %v1451 = vpow.pop %v1450
    %v1452 = vmul.f32 %v1437, %v1042
    %v1453 = vmul.f32 %v1439, %v1043
    %v1454 = vmul.f32 %v1441, %v1044
    %v1455 = vmul.f32 %v1443, %v1045
    %v1456 = vmul.f32 %v1445, %v1046
    %v1457 = vmul.f32 %v1447, %v1047
    %v1458 = vmul.f32 %v1449, %v1048
    %v1459 = vmul.f32 %v1451, %v1049
    %v1460 = vperm.slane %v1015, 2
    %v1461 = vperm.slane %v1035, 2
    %v1462 = vmul.f32 %v1452, %v1460
    %v1463 = vmul.f32 %v1453, %v1461
    %v1464 = vmul.f32 %v1454, %v1460
    %v1465 = vmul.f32 %v1455, %v1461
    %v1466 = vmul.f32 %v1456, %v1460
    %v1467 = vmul.f32 %v1457, %v1461
    %v1468 = vmul.f32 %v1458, %v1460
    %v1469 = vmul.f32 %v1459, %v1461
    %v1470 = vadd.f32 %v1462, %v1463
    %1471 = vadd.xlane.f32.xlu0 %v1470
    %v1472 = vpop.xlane.xlu0 %1471
    %v1473 = vadd.f32 %v1464, %v1465
    %1474 = vadd.xlane.f32.xlu0 %v1473
    %v1475 = vpop.xlane.xlu0 %1474
    %v1476 = vadd.f32 %v1466, %v1467
    %1477 = vadd.xlane.f32.xlu0 %v1476
    %v1478 = vpop.xlane.xlu0 %1477
    %v1479 = vadd.f32 %v1468, %v1469
    %1480 = vadd.xlane.f32.xlu0 %v1479
    %v1481 = vpop.xlane.xlu0 %1480
    %v1482 = vadd.f32 %v1452, %v1453
    %1483 = vadd.xlane.f32.xlu0 %v1482
    %v1484 = vpop.xlane.xlu0 %1483
    %v1485 = vadd.f32 %v1454, %v1455
    %1486 = vadd.xlane.f32.xlu0 %v1485
    %v1487 = vpop.xlane.xlu0 %1486
    %v1488 = vadd.f32 %v1456, %v1457
    %1489 = vadd.xlane.f32.xlu0 %v1488
    %v1490 = vpop.xlane.xlu0 %1489
    %v1491 = vadd.f32 %v1458, %v1459
    %1492 = vadd.xlane.f32.xlu0 %v1491
    %v1493 = vpop.xlane.xlu0 %1492
    %v1494 = vrcp.pop %v1484
    %v1495 = vrcp.pop %v1487
    %v1496 = vrcp.pop %v1490
    %v1497 = vrcp.pop %v1493
    %v1498 = vmul.f32 %v1472, %v1494
    %v1499 = vmul.f32 %v1475, %v1495
    %v1500 = vmul.f32 %v1478, %v1496
    %v1501 = vmul.f32 %v1481, %v1497
    %v1502 = vadd.f32 %v1354, %v1498
    %v1503 = vadd.f32 %v1355, %v1499
    %v1504 = vadd.f32 %v1356, %v1500
    %v1505 = vadd.f32 %v1357, %v1501
    %1506 = vset.pattern.permute.xlu0 3
    %1507 = vperm.xlu0 %1506, %v894
    %v1508 = vpop.permute.xlu0 %1507
    %1510 = vset.pattern.permute.xlu0 3
    %1511 = vperm.xlu0 %1510, %v895
    %v1512 = vpop.permute.xlu0 %1511
    %1514 = vset.pattern.permute.xlu0 3
    %1515 = vperm.xlu0 %1514, %v896
    %v1516 = vpop.permute.xlu0 %1515
    %1518 = vset.pattern.permute.xlu0 3
    %1519 = vperm.xlu0 %1518, %v897
    %v1520 = vpop.permute.xlu0 %1519
    %v1522 = vperm.slane %v1015, 7
    %v1523 = vperm.slane %v1035, 7
    %v1524 = vadd.f32 %v1508, %v1522
    %v1525 = vadd.f32 %v1508, %v1523
    %v1526 = vadd.f32 %v1512, %v1522
    %v1527 = vadd.f32 %v1512, %v1523
    %v1528 = vadd.f32 %v1516, %v1522
    %v1529 = vadd.f32 %v1516, %v1523
    %v1530 = vadd.f32 %v1520, %v1522
    %v1531 = vadd.f32 %v1520, %v1523
    %vm1532 = vcmp.ge.f32.partialorder %v1524, 0.0
    %vm1533 = vcmp.ge.f32.partialorder %v1525, 0.0
    %vm1534 = vcmp.ge.f32.partialorder %v1526, 0.0
    %vm1535 = vcmp.ge.f32.partialorder %v1527, 0.0
    %vm1536 = vcmp.ge.f32.partialorder %v1528, 0.0
    %vm1537 = vcmp.ge.f32.partialorder %v1529, 0.0
    %vm1538 = vcmp.ge.f32.partialorder %v1530, 0.0
    %vm1539 = vcmp.ge.f32.partialorder %v1531, 0.0
    %v1540 = vmul.f32 %v1524, 0.2
    %v1541 = vmul.f32 %v1525, 0.2
    %v1542 = vmul.f32 %v1526, 0.2
    %v1543 = vmul.f32 %v1527, 0.2
    %v1544 = vmul.f32 %v1528, 0.2
    %v1545 = vmul.f32 %v1529, 0.2
    %v1546 = vmul.f32 %v1530, 0.2
    %v1547 = vmul.f32 %v1531, 0.2
    %v1548 = vsel %vm1532, %v1524, %v1540
    %v1549 = vsel %vm1533, %v1525, %v1541
    %v1550 = vsel %vm1534, %v1526, %v1542
    %v1551 = vsel %vm1535, %v1527, %v1543
    %v1552 = vsel %vm1536, %v1528, %v1544
    %v1553 = vsel %vm1537, %v1529, %v1545
    %v1554 = vsel %vm1538, %v1530, %v1546
    %v1555 = vsel %vm1539, %v1531, %v1547
    %v1556 = vsel %vm1050, %v1548, -1e+30
    %v1557 = vsel %vm1051, %v1549, -1e+30
    %v1558 = vsel %vm1052, %v1550, -1e+30
    %v1559 = vsel %vm1053, %v1551, -1e+30
    %v1560 = vsel %vm1054, %v1552, -1e+30
    %v1561 = vsel %vm1055, %v1553, -1e+30
    %v1562 = vsel %vm1056, %v1554, -1e+30
    %v1563 = vsel %vm1057, %v1555, -1e+30
    %v1564 = vmax.f32 %v1556, %v1557
    %1565 = vmax.xlane.f32.xlu0 %v1564
    %v1566 = vpop.xlane.xlu0 %1565
    %v1567 = vmax.f32 %v1558, %v1559
    %1568 = vmax.xlane.f32.xlu0 %v1567
    %v1569 = vpop.xlane.xlu0 %1568
    %v1570 = vmax.f32 %v1560, %v1561
    %1571 = vmax.xlane.f32.xlu0 %v1570
    %v1572 = vpop.xlane.xlu0 %1571
    %v1573 = vmax.f32 %v1562, %v1563
    %1574 = vmax.xlane.f32.xlu0 %v1573
    %v1575 = vpop.xlane.xlu0 %1574
    %v1576 = vsub.f32 %v1556, %v1566
    %v1577 = vsub.f32 %v1557, %v1566
    %v1578 = vsub.f32 %v1558, %v1569
    %v1579 = vsub.f32 %v1559, %v1569
    %v1580 = vsub.f32 %v1560, %v1572
    %v1581 = vsub.f32 %v1561, %v1572
    %v1582 = vsub.f32 %v1562, %v1575
    %v1583 = vsub.f32 %v1563, %v1575
    %v1584 = vmul.f32 %v1576, 1.442695
    %v1585 = vpow.pop %v1584
    %v1586 = vmul.f32 %v1577, 1.442695
    %v1587 = vpow.pop %v1586
    %v1588 = vmul.f32 %v1578, 1.442695
    %v1589 = vpow.pop %v1588
    %v1590 = vmul.f32 %v1579, 1.442695
    %v1591 = vpow.pop %v1590
    %v1592 = vmul.f32 %v1580, 1.442695
    %v1593 = vpow.pop %v1592
    %v1594 = vmul.f32 %v1581, 1.442695
    %v1595 = vpow.pop %v1594
    %v1596 = vmul.f32 %v1582, 1.442695
    %v1597 = vpow.pop %v1596
    %v1598 = vmul.f32 %v1583, 1.442695
    %v1599 = vpow.pop %v1598
    %v1600 = vmul.f32 %v1585, %v1042
    %v1601 = vmul.f32 %v1587, %v1043
    %v1602 = vmul.f32 %v1589, %v1044
    %v1603 = vmul.f32 %v1591, %v1045
    %v1604 = vmul.f32 %v1593, %v1046
    %v1605 = vmul.f32 %v1595, %v1047
    %v1606 = vmul.f32 %v1597, %v1048
    %v1607 = vmul.f32 %v1599, %v1049
    %v1608 = vperm.slane %v1015, 3
    %v1609 = vperm.slane %v1035, 3
    %v1610 = vmul.f32 %v1600, %v1608
    %v1611 = vmul.f32 %v1601, %v1609
    %v1612 = vmul.f32 %v1602, %v1608
    %v1613 = vmul.f32 %v1603, %v1609
    %v1614 = vmul.f32 %v1604, %v1608
    %v1615 = vmul.f32 %v1605, %v1609
    %v1616 = vmul.f32 %v1606, %v1608
    %v1617 = vmul.f32 %v1607, %v1609
    %v1618 = vadd.f32 %v1610, %v1611
    %1619 = vadd.xlane.f32.xlu0 %v1618
    %v1620 = vpop.xlane.xlu0 %1619
    %v1621 = vadd.f32 %v1612, %v1613
    %1622 = vadd.xlane.f32.xlu0 %v1621
    %v1623 = vpop.xlane.xlu0 %1622
    %v1624 = vadd.f32 %v1614, %v1615
    %1625 = vadd.xlane.f32.xlu0 %v1624
    %v1626 = vpop.xlane.xlu0 %1625
    %v1627 = vadd.f32 %v1616, %v1617
    %1628 = vadd.xlane.f32.xlu0 %v1627
    %v1629 = vpop.xlane.xlu0 %1628
    %v1630 = vadd.f32 %v1600, %v1601
    %1631 = vadd.xlane.f32.xlu0 %v1630
    %v1632 = vpop.xlane.xlu0 %1631
    %v1633 = vadd.f32 %v1602, %v1603
    %1634 = vadd.xlane.f32.xlu0 %v1633
    %v1635 = vpop.xlane.xlu0 %1634
    %v1636 = vadd.f32 %v1604, %v1605
    %1637 = vadd.xlane.f32.xlu0 %v1636
    %v1638 = vpop.xlane.xlu0 %1637
    %v1639 = vadd.f32 %v1606, %v1607
    %1640 = vadd.xlane.f32.xlu0 %v1639
    %v1641 = vpop.xlane.xlu0 %1640
    %v1642 = vrcp.pop %v1632
    %v1643 = vrcp.pop %v1635
    %v1644 = vrcp.pop %v1638
    %v1645 = vrcp.pop %v1641
    %v1646 = vmul.f32 %v1620, %v1642
    %v1647 = vmul.f32 %v1623, %v1643
    %v1648 = vmul.f32 %v1626, %v1644
    %v1649 = vmul.f32 %v1629, %v1645
    %v1650 = vadd.f32 %v1502, %v1646
    %v1651 = vadd.f32 %v1503, %v1647
    %v1652 = vadd.f32 %v1504, %v1648
    %v1653 = vadd.f32 %v1505, %v1649
    %v1654 = vadd.f32 %v888, %v1650
    %v1655 = vadd.f32 %v889, %v1651
    %v1656 = vadd.f32 %v890, %v1652
    %v1657 = vadd.f32 %v891, %v1653
    %v1658 = vld [vmem:[#allocation2] sm:$0x1]
    %v1660 = vperm.slane %v1658, 0
    %v1662 = vadd.f32 %v1654, %v1660
    %v1663 = vadd.f32 %v1655, %v1660
    %v1664 = vadd.f32 %v1656, %v1660
    %v1665 = vadd.f32 %v1657, %v1660
    %vm1666 = vcmask 7168
    %1667 = vst.msk [vmem:[%s10] sm:$0xff] %vm1666, %v1662
    %1668 = vst.msk [vmem:[%s10 + $0x8] sm:$0xff] %vm1666, %v1663
    %1669 = vst.msk [vmem:[%s10 + $0x10] sm:$0xff] %vm1666, %v1664
    %1670 = vst.msk [vmem:[%s10 + $0x18] sm:$0xff] %vm1666, %v1665
    // Predicated region
    $region62: #{tpu_custom_call.1} parent=1 // pred_check
      _
    $region63: #{tpu_custom_call.1} parent=1 // pred_check_branch
      %1672 = sbr.rel (0) target = $region65
    $region64: #{tpu_custom_call.1} parent=1 // pred_region
      _
    $region65: #{tpu_custom_call.1} parent=1 // pred_fallthru
      _
    // Predicated region
    $region66: #{tpu_custom_call.1} parent=1 // pred_check
      _
    $region67: #{tpu_custom_call.1} parent=1 // pred_check_branch
      %1674 = sbr.rel (0) target = $region69
    $region68: #{tpu_custom_call.1} parent=1 // pred_region
      _
    $region69: #{tpu_custom_call.1} parent=1 // pred_fallthru
      _
    %1675 = vsyncpa [#allocation4], 1
    %1676 = vsyncpa [#allocation6], 1
    %1677 = vsyncpa [#allocation9], 1

</llo_original>
